<compile_context>
chip_gen: v6e
topology: v6e:2x2x1
jax: 0.10.0
libtpu: 0.0.40
codegen_flags: <defaults>
</compile_context>

<pallas_src>
import functools

import jax
import jax.numpy as jnp
from jax.experimental import pallas as pl
from jax.experimental.pallas import tpu as pltpu

EPS = 1e-5


def _layernorm(y, g, b):
    mean = jnp.mean(y, axis=-1, keepdims=True)
    var = jnp.mean((y - mean) ** 2, axis=-1, keepdims=True)
    return (y - mean) * jax.lax.rsqrt(var + EPS) * g + b


# --------------------------------------------------------------------------
# Fused encoder-layer kernel: one grid step per batch element.
# --------------------------------------------------------------------------
def _encoder_layer_kernel(x_ref, w_in_ref, b_in_ref, bk_ref, bv_ref,
                          wo_ref, bo_ref, w1_ref, b1_ref, w2_ref, b2_ref,
                          g1_ref, be1_ref, g2_ref, be2_ref, o_ref, *, H, hd):
    E = H * hd
    x = x_ref[0].astype(jnp.float32)                  # (L, E)
    x_bf = x.astype(jnp.bfloat16)

    # Fused QKV in-projection (1/sqrt(hd) already folded into the Q columns).
    qkv = jnp.dot(x_bf, w_in_ref[...],
                  preferred_element_type=jnp.float32) + b_in_ref[...]   # (L, 3E)

    bias_k = bk_ref[...]                              # (1, E) f32
    bias_v = bv_ref[...]                              # (1, E) f32

    # Per-head attention. The bias_k/bias_v "extra key row" is folded in
    # analytically so S stays == L (no concat, no odd sublane extents).
    acc = jnp.zeros(x.shape, jnp.float32)             # out-projection accumulator
    for h in range(H):
        lo, hi = h * hd, (h + 1) * hd
        q_h = qkv[:, lo:hi]                           # (L, hd) f32
        k_h = qkv[:, E + lo:E + hi]                   # (L, hd)
        v_h = qkv[:, 2 * E + lo:2 * E + hi]           # (L, hd)
        bk_h = bias_k[:, lo:hi]                       # (1, hd)
        bv_h = bias_v[:, lo:hi]                       # (1, hd)

        s = jax.lax.dot_general(                      # (L, L) scores
            q_h.astype(jnp.bfloat16), k_h.astype(jnp.bfloat16),
            (((1,), (1,)), ((), ())), preferred_element_type=jnp.float32)
        s_b = jnp.sum(q_h * bk_h, axis=-1, keepdims=True)          # (L, 1)

        m = jnp.maximum(jnp.max(s, axis=-1, keepdims=True), s_b)   # (L, 1)
        p = jnp.exp(s - m)                                         # (L, L)
        p_b = jnp.exp(s_b - m)                                     # (L, 1)
        inv = pl.reciprocal(jnp.sum(p, axis=-1, keepdims=True) + p_b,
                            approx=True)                           # (L, 1)
        ctx = (jnp.dot(p.astype(jnp.bfloat16), v_h.astype(jnp.bfloat16),
                       preferred_element_type=jnp.float32)
               + p_b * bv_h) * inv                                 # (L, hd)

        # Out-projection: accumulate ctx_h @ Wo^T[h*hd:(h+1)*hd, :] directly,
        # no (L, E) context re-assembly needed.
        acc = acc + jnp.dot(ctx.astype(jnp.bfloat16), wo_ref[h],
                            preferred_element_type=jnp.float32)    # (L, E)

    attn = acc + bo_ref[...]

    # x = norm1(x + dropout1(attn))         (dropout = identity in eval mode)
    y = _layernorm(x + attn, g1_ref[...], be1_ref[...])

    # FFN (the reference module drops the residual around the FFN).
    hdd = jnp.dot(y.astype(jnp.bfloat16), w1_ref[...],
                  preferred_element_type=jnp.float32) + b1_ref[...]
    hdd = jnp.maximum(hdd, 0.0)                        # ReLU
    f = jnp.dot(hdd.astype(jnp.bfloat16), w2_ref[...],
                preferred_element_type=jnp.float32) + b2_ref[...]
    f = f + f                                          # x = x + dropout2(x)
    o_ref[0] = _layernorm(f, g2_ref[...], be2_ref[...]).astype(o_ref.dtype)


# --------------------------------------------------------------------------
# Wrapper: one-time parameter layout plumbing + a single pallas_call.
# --------------------------------------------------------------------------
def transformer_encoder_layer(x, p):
    L, N, E = x.shape
    H = int(p["head_num"])
    hd = E // H
    FF = p["linear1_weight"].shape[0]
    scale = float(hd) ** (-0.5)

    f32, bf16 = jnp.float32, jnp.bfloat16

    # Fold the 1/sqrt(hd) scaling into the Q rows of the in-projection.
    scale_vec = jnp.concatenate(
        [jnp.full((E,), scale, f32), jnp.ones((2 * E,), f32)])
    w_in_t = (p["in_proj_weight"] * scale_vec[:, None]).T.astype(bf16)  # (E, 3E)
    b_in = (p["in_proj_bias"] * scale_vec).reshape(1, 3 * E).astype(f32)

    bias_k = p["bias_k"].reshape(1, E).astype(f32)
    bias_v = p["bias_v"].reshape(1, E).astype(f32)

    wo_heads = p["out_proj_weight"].T.reshape(H, hd, E).astype(bf16)    # (H, hd, E)
    bo = p["out_proj_bias"].reshape(1, E).astype(f32)

    w1_t = p["linear1_weight"].T.astype(bf16)                           # (E, FF)
    b1 = p["linear1_bias"].reshape(1, FF).astype(f32)
    w2_t = p["linear2_weight"].T.astype(bf16)                           # (FF, E)
    b2 = p["linear2_bias"].reshape(1, E).astype(f32)

    g1 = p["norm1_weight"].reshape(1, E).astype(f32)
    be1 = p["norm1_bias"].reshape(1, E).astype(f32)
    g2 = p["norm2_weight"].reshape(1, E).astype(f32)
    be2 = p["norm2_bias"].reshape(1, E).astype(f32)

    x_nle = jnp.transpose(x, (1, 0, 2))                                 # (N, L, E)

    def full2(shape):
        return pl.BlockSpec(shape, lambda n: (0, 0))

    kernel = functools.partial(_encoder_layer_kernel, H=H, hd=hd)
    out_nle = pl.pallas_call(
        kernel,
        out_shape=jax.ShapeDtypeStruct((N, L, E), x.dtype),
        grid=(N,),
        in_specs=[
            pl.BlockSpec((1, L, E), lambda n: (n, 0, 0)),      # x (per batch)
            full2((E, 3 * E)),                                 # W_in^T (bf16)
            full2((1, 3 * E)),                                 # b_in
            full2((1, E)),                                     # bias_k
            full2((1, E)),                                     # bias_v
            pl.BlockSpec((H, hd, E), lambda n: (0, 0, 0)),     # W_o^T per head
            full2((1, E)),                                     # b_o
            full2((E, FF)),                                    # W1^T (bf16)
            full2((1, FF)),                                    # b1
            full2((FF, E)),                                    # W2^T (bf16)
            full2((1, E)),                                     # b2
            full2((1, E)), full2((1, E)),                      # LN1 gamma/beta
            full2((1, E)), full2((1, E)),                      # LN2 gamma/beta
        ],
        out_specs=pl.BlockSpec((1, L, E), lambda n: (n, 0, 0)),
        compiler_params=pltpu.CompilerParams(
            dimension_semantics=("parallel",)),
    )(x_nle, w_in_t, b_in, bias_k, bias_v, wo_heads, bo,
      w1_t, b1, w2_t, b2, g1, be1, g2, be2)

    return jnp.transpose(out_nle, (1, 0, 2))                   # back to (L, N, E)


# --------------------------------------------------------------------------
# Pure-JAX reference (mirrors the PyTorch forward in eval mode, f32/HIGHEST)
# --------------------------------------------------------------------------
def reference(x, p):
    L, N, E = x.shape
    H = int(p["head_num"])
    hd = E // H
    scale = float(hd) ** (-0.5)
    mm = functools.partial(jnp.matmul, precision=jax.lax.Precision.HIGHEST)

    out = mm(x, p["in_proj_weight"].T) + p["in_proj_bias"]
    q, k, v = jnp.split(out, 3, axis=-1)
    q = q * scale
    k = jnp.concatenate([k, jnp.tile(p["bias_k"], (1, N, 1))], axis=0)
    v = jnp.concatenate([v, jnp.tile(p["bias_v"], (1, N, 1))], axis=0)
    q = q.reshape(L, N * H, hd).transpose(1, 0, 2)
    k = k.reshape(-1, N * H, hd).transpose(1, 0, 2)
    v = v.reshape(-1, N * H, hd).transpose(1, 0, 2)
    w = jax.nn.softmax(mm(q, k.transpose(0, 2, 1)), axis=-1)
    attn = mm(w, v).transpose(1, 0, 2).reshape(L, N, E)
    attn = mm(attn, p["out_proj_weight"].T) + p["out_proj_bias"]
    y = _layernorm(x + attn, p["norm1_weight"], p["norm1_bias"])
    h = jnp.maximum(mm(y, p["linear1_weight"].T) + p["linear1_bias"], 0.0)
    f = mm(h, p["linear2_weight"].T) + p["linear2_bias"]
    f = f + f
    return _layernorm(f, p["norm2_weight"], p["norm2_bias"])


if __name__ == "__main__":
    # Small shapes consistent with the module: model_dim=32, heads=4, ff=64,
    # seq=8, batch=2.
    L, N, E, H, FF = 8, 2, 32, 4, 64

    key = jax.random.PRNGKey(0)
    ks = jax.random.split(key, 11)

    def init(k, shape, scale=0.05):
        return (scale * jax.random.normal(k, shape)).astype(jnp.float32)

    params = dict(
        head_num=H,
        in_proj_weight=init(ks[0], (3 * E, E)),
        in_proj_bias=init(ks[1], (3 * E,)),
        bias_k=init(ks[2], (1, 1, E)),
        bias_v=init(ks[3], (1, 1, E)),
        out_proj_weight=init(ks[4], (E, E)),
        out_proj_bias=init(ks[5], (E,)),
        linear1_weight=init(ks[6], (FF, E)),
        linear1_bias=init(ks[7], (FF,)),
        linear2_weight=init(ks[8], (E, FF)),
        linear2_bias=init(ks[9], (E,)),
        norm1_weight=jnp.ones((E,), jnp.float32),
        norm1_bias=jnp.zeros((E,), jnp.float32),
        norm2_weight=jnp.ones((E,), jnp.float32),
        norm2_bias=jnp.zeros((E,), jnp.float32),
    )

    x = jax.random.normal(ks[10], (L, N, E), jnp.float32)

    out = jax.block_until_ready(transformer_encoder_layer(x, params))
    ref = jax.block_until_ready(reference(x, params))

    assert out.shape == (L, N, E)
    # bf16 matmul operands (f32 accumulate) shift results by <~1e-2 relative.
    assert jnp.allclose(out, ref, atol=2e-2, rtol=2e-2), "mismatch vs reference"

    print("KERNEL_OK")
</pallas_src>

<mosaic_0001>
module attributes {stable_mosaic.version = 11 : i64} {
  func.func @_encoder_layer_kernel(%arg0: i32, %arg1: memref<1x8x32xf32, #tpu.memory_space<vmem>>, %arg2: memref<32x96xbf16, #tpu.memory_space<vmem>>, %arg3: memref<1x96xf32, #tpu.memory_space<vmem>>, %arg4: memref<1x32xf32, #tpu.memory_space<vmem>>, %arg5: memref<1x32xf32, #tpu.memory_space<vmem>>, %arg6: memref<4x8x32xbf16, #tpu.memory_space<vmem>>, %arg7: memref<1x32xf32, #tpu.memory_space<vmem>>, %arg8: memref<32x64xbf16, #tpu.memory_space<vmem>>, %arg9: memref<1x64xf32, #tpu.memory_space<vmem>>, %arg10: memref<64x32xbf16, #tpu.memory_space<vmem>>, %arg11: memref<1x32xf32, #tpu.memory_space<vmem>>, %arg12: memref<1x32xf32, #tpu.memory_space<vmem>>, %arg13: memref<1x32xf32, #tpu.memory_space<vmem>>, %arg14: memref<1x32xf32, #tpu.memory_space<vmem>>, %arg15: memref<1x32xf32, #tpu.memory_space<vmem>>, %arg16: memref<1x8x32xf32, #tpu.memory_space<vmem>>) attributes {dimension_semantics = [#tpu.dimension_semantics<parallel>], iteration_bounds = array<i64: 2>, scalar_prefetch = 0 : i64, scratch_operands = 0 : i64, tpu.core_type = #tpu.core_type<tc>, window_params = [{transform_indices = @transform_0, window_bounds = array<i64: 1, 8, 32>}, {pipeline_mode = #tpu.pipeline_mode<synchronous>, transform_indices = @transform_1, window_bounds = array<i64: 32, 96>}, {pipeline_mode = #tpu.pipeline_mode<synchronous>, transform_indices = @transform_2, window_bounds = array<i64: 1, 96>}, {pipeline_mode = #tpu.pipeline_mode<synchronous>, transform_indices = @transform_3, window_bounds = array<i64: 1, 32>}, {pipeline_mode = #tpu.pipeline_mode<synchronous>, transform_indices = @transform_4, window_bounds = array<i64: 1, 32>}, {pipeline_mode = #tpu.pipeline_mode<synchronous>, transform_indices = @transform_5, window_bounds = array<i64: 4, 8, 32>}, {pipeline_mode = #tpu.pipeline_mode<synchronous>, transform_indices = @transform_6, window_bounds = array<i64: 1, 32>}, {pipeline_mode = #tpu.pipeline_mode<synchronous>, transform_indices = @transform_7, window_bounds = array<i64: 32, 64>}, {pipeline_mode = #tpu.pipeline_mode<synchronous>, transform_indices = @transform_8, window_bounds = array<i64: 1, 64>}, {pipeline_mode = #tpu.pipeline_mode<synchronous>, transform_indices = @transform_9, window_bounds = array<i64: 64, 32>}, {pipeline_mode = #tpu.pipeline_mode<synchronous>, transform_indices = @transform_10, window_bounds = array<i64: 1, 32>}, {pipeline_mode = #tpu.pipeline_mode<synchronous>, transform_indices = @transform_11, window_bounds = array<i64: 1, 32>}, {pipeline_mode = #tpu.pipeline_mode<synchronous>, transform_indices = @transform_12, window_bounds = array<i64: 1, 32>}, {pipeline_mode = #tpu.pipeline_mode<synchronous>, transform_indices = @transform_13, window_bounds = array<i64: 1, 32>}, {pipeline_mode = #tpu.pipeline_mode<synchronous>, transform_indices = @transform_14, window_bounds = array<i64: 1, 32>}, {transform_indices = @transform_15, window_bounds = array<i64: 1, 8, 32>}]} {
    %c0 = arith.constant 0 : index
    %c0_0 = arith.constant 0 : index
    %c0_1 = arith.constant 0 : index
    %0 = vector.load %arg1[%c0, %c0_0, %c0_1] : memref<1x8x32xf32, #tpu.memory_space<vmem>>, vector<1x8x32xf32>
    %1 = vector.shape_cast %0 : vector<1x8x32xf32> to vector<8x32xf32>
    %2 = arith.truncf %1 : vector<8x32xf32> to vector<8x32xbf16>
    %c0_2 = arith.constant 0 : index
    %c0_3 = arith.constant 0 : index
    %3 = vector.load %arg2[%c0_2, %c0_3] : memref<32x96xbf16, #tpu.memory_space<vmem>>, vector<32x96xbf16>
    %cst = arith.constant dense<0.000000e+00> : vector<8x96xf32>
    %4 = tpu.matmul %2, %3, %cst {dimension_numbers = #tpu.dot_dimension_numbers<[1], [0], [0], [1], [0, 0, 1, 1], [], []>} : vector<8x32xbf16>, vector<32x96xbf16>, vector<8x96xf32> -> vector<8x96xf32>
    %c0_4 = arith.constant 0 : index
    %c0_5 = arith.constant 0 : index
    %5 = vector.load %arg3[%c0_4, %c0_5] : memref<1x96xf32, #tpu.memory_space<vmem>>, vector<1x96xf32>
    %6 = vector.broadcast %5 : vector<1x96xf32> to vector<8x96xf32>
    %7 = arith.addf %4, %6 : vector<8x96xf32>
    %c0_6 = arith.constant 0 : index
    %c0_7 = arith.constant 0 : index
    %8 = vector.load %arg4[%c0_6, %c0_7] : memref<1x32xf32, #tpu.memory_space<vmem>>, vector<1x32xf32>
    %c0_8 = arith.constant 0 : index
    %c0_9 = arith.constant 0 : index
    %9 = vector.load %arg5[%c0_8, %c0_9] : memref<1x32xf32, #tpu.memory_space<vmem>>, vector<1x32xf32>
    %cst_10 = arith.constant 0.000000e+00 : f32
    %10 = vector.broadcast %cst_10 : f32 to vector<8x32xf32>
    %11 = vector.extract_strided_slice %7 {offsets = [0, 0], sizes = [8, 8], strides = [1, 1]} : vector<8x96xf32> to vector<8x8xf32>
    %12 = vector.extract_strided_slice %7 {offsets = [0, 32], sizes = [8, 8], strides = [1, 1]} : vector<8x96xf32> to vector<8x8xf32>
    %13 = vector.extract_strided_slice %7 {offsets = [0, 64], sizes = [8, 8], strides = [1, 1]} : vector<8x96xf32> to vector<8x8xf32>
    %14 = vector.extract_strided_slice %8 {offsets = [0, 0], sizes = [1, 8], strides = [1, 1]} : vector<1x32xf32> to vector<1x8xf32>
    %15 = vector.extract_strided_slice %9 {offsets = [0, 0], sizes = [1, 8], strides = [1, 1]} : vector<1x32xf32> to vector<1x8xf32>
    %16 = arith.truncf %11 : vector<8x8xf32> to vector<8x8xbf16>
    %17 = arith.truncf %12 : vector<8x8xf32> to vector<8x8xbf16>
    %cst_11 = arith.constant dense<0.000000e+00> : vector<8x8xf32>
    %18 = tpu.matmul %16, %17, %cst_11 {dimension_numbers = #tpu.dot_dimension_numbers<[1], [1], [0], [0], [0, 0, 1, 0], [], []>} : vector<8x8xbf16>, vector<8x8xbf16>, vector<8x8xf32> -> vector<8x8xf32>
    %19 = vector.broadcast %14 : vector<1x8xf32> to vector<8x8xf32>
    %20 = arith.mulf %11, %19 : vector<8x8xf32>
    %cst_12 = arith.constant dense<0.000000e+00> : vector<8xf32>
    %21 = vector.multi_reduction <add>, %20, %cst_12 [1] : vector<8x8xf32> to vector<8xf32>
    %22 = vector.shape_cast %21 : vector<8xf32> to vector<8x1xf32>
    %cst_13 = arith.constant dense<0xFF800000> : vector<8xf32>
    %23 = vector.multi_reduction <maximumf>, %18, %cst_13 [1] : vector<8x8xf32> to vector<8xf32>
    %24 = vector.shape_cast %23 : vector<8xf32> to vector<8x1xf32>
    %25 = arith.maximumf %24, %22 : vector<8x1xf32>
    %26 = vector.broadcast %25 : vector<8x1xf32> to vector<8x8xf32>
    %27 = arith.subf %18, %26 : vector<8x8xf32>
    %28 = math.exp %27 : vector<8x8xf32>
    %29 = arith.subf %22, %25 : vector<8x1xf32>
    %30 = math.exp %29 : vector<8x1xf32>
    %cst_14 = arith.constant dense<0.000000e+00> : vector<8xf32>
    %31 = vector.multi_reduction <add>, %28, %cst_14 [1] : vector<8x8xf32> to vector<8xf32>
    %32 = vector.shape_cast %31 : vector<8xf32> to vector<8x1xf32>
    %33 = arith.addf %32, %30 : vector<8x1xf32>
    %34 = tpu.reciprocal %33 {approx = true} : vector<8x1xf32> -> vector<8x1xf32>
    %35 = arith.truncf %28 : vector<8x8xf32> to vector<8x8xbf16>
    %36 = arith.truncf %13 : vector<8x8xf32> to vector<8x8xbf16>
    %cst_15 = arith.constant dense<0.000000e+00> : vector<8x8xf32>
    %37 = tpu.matmul %35, %36, %cst_15 {dimension_numbers = #tpu.dot_dimension_numbers<[1], [0], [0], [1], [0, 0, 1, 1], [], []>} : vector<8x8xbf16>, vector<8x8xbf16>, vector<8x8xf32> -> vector<8x8xf32>
    %38 = vector.broadcast %30 : vector<8x1xf32> to vector<8x8xf32>
    %39 = vector.broadcast %15 : vector<1x8xf32> to vector<8x8xf32>
    %40 = arith.mulf %38, %39 : vector<8x8xf32>
    %41 = arith.addf %37, %40 : vector<8x8xf32>
    %42 = vector.broadcast %34 : vector<8x1xf32> to vector<8x8xf32>
    %43 = arith.mulf %41, %42 : vector<8x8xf32>
    %44 = arith.truncf %43 : vector<8x8xf32> to vector<8x8xbf16>
    %c0_16 = arith.constant 0 : index
    %c0_17 = arith.constant 0 : index
    %c0_18 = arith.constant 0 : index
    %45 = vector.load %arg6[%c0_16, %c0_17, %c0_18] : memref<4x8x32xbf16, #tpu.memory_space<vmem>>, vector<1x8x32xbf16>
    %46 = vector.shape_cast %45 : vector<1x8x32xbf16> to vector<8x32xbf16>
    %cst_19 = arith.constant dense<0.000000e+00> : vector<8x32xf32>
    %47 = tpu.matmul %44, %46, %cst_19 {dimension_numbers = #tpu.dot_dimension_numbers<[1], [0], [0], [1], [0, 0, 1, 1], [], []>} : vector<8x8xbf16>, vector<8x32xbf16>, vector<8x32xf32> -> vector<8x32xf32>
    %48 = arith.addf %10, %47 : vector<8x32xf32>
    %49 = vector.extract_strided_slice %7 {offsets = [0, 8], sizes = [8, 8], strides = [1, 1]} : vector<8x96xf32> to vector<8x8xf32>
    %50 = vector.extract_strided_slice %7 {offsets = [0, 40], sizes = [8, 8], strides = [1, 1]} : vector<8x96xf32> to vector<8x8xf32>
    %51 = vector.extract_strided_slice %7 {offsets = [0, 72], sizes = [8, 8], strides = [1, 1]} : vector<8x96xf32> to vector<8x8xf32>
    %52 = vector.extract_strided_slice %8 {offsets = [0, 8], sizes = [1, 8], strides = [1, 1]} : vector<1x32xf32> to vector<1x8xf32>
    %53 = vector.extract_strided_slice %9 {offsets = [0, 8], sizes = [1, 8], strides = [1, 1]} : vector<1x32xf32> to vector<1x8xf32>
    %54 = arith.truncf %49 : vector<8x8xf32> to vector<8x8xbf16>
    %55 = arith.truncf %50 : vector<8x8xf32> to vector<8x8xbf16>
    %cst_20 = arith.constant dense<0.000000e+00> : vector<8x8xf32>
    %56 = tpu.matmul %54, %55, %cst_20 {dimension_numbers = #tpu.dot_dimension_numbers<[1], [1], [0], [0], [0, 0, 1, 0], [], []>} : vector<8x8xbf16>, vector<8x8xbf16>, vector<8x8xf32> -> vector<8x8xf32>
    %57 = vector.broadcast %52 : vector<1x8xf32> to vector<8x8xf32>
    %58 = arith.mulf %49, %57 : vector<8x8xf32>
    %cst_21 = arith.constant dense<0.000000e+00> : vector<8xf32>
    %59 = vector.multi_reduction <add>, %58, %cst_21 [1] : vector<8x8xf32> to vector<8xf32>
    %60 = vector.shape_cast %59 : vector<8xf32> to vector<8x1xf32>
    %cst_22 = arith.constant dense<0xFF800000> : vector<8xf32>
    %61 = vector.multi_reduction <maximumf>, %56, %cst_22 [1] : vector<8x8xf32> to vector<8xf32>
    %62 = vector.shape_cast %61 : vector<8xf32> to vector<8x1xf32>
    %63 = arith.maximumf %62, %60 : vector<8x1xf32>
    %64 = vector.broadcast %63 : vector<8x1xf32> to vector<8x8xf32>
    %65 = arith.subf %56, %64 : vector<8x8xf32>
    %66 = math.exp %65 : vector<8x8xf32>
    %67 = arith.subf %60, %63 : vector<8x1xf32>
    %68 = math.exp %67 : vector<8x1xf32>
    %cst_23 = arith.constant dense<0.000000e+00> : vector<8xf32>
    %69 = vector.multi_reduction <add>, %66, %cst_23 [1] : vector<8x8xf32> to vector<8xf32>
    %70 = vector.shape_cast %69 : vector<8xf32> to vector<8x1xf32>
    %71 = arith.addf %70, %68 : vector<8x1xf32>
    %72 = tpu.reciprocal %71 {approx = true} : vector<8x1xf32> -> vector<8x1xf32>
    %73 = arith.truncf %66 : vector<8x8xf32> to vector<8x8xbf16>
    %74 = arith.truncf %51 : vector<8x8xf32> to vector<8x8xbf16>
    %cst_24 = arith.constant dense<0.000000e+00> : vector<8x8xf32>
    %75 = tpu.matmul %73, %74, %cst_24 {dimension_numbers = #tpu.dot_dimension_numbers<[1], [0], [0], [1], [0, 0, 1, 1], [], []>} : vector<8x8xbf16>, vector<8x8xbf16>, vector<8x8xf32> -> vector<8x8xf32>
    %76 = vector.broadcast %68 : vector<8x1xf32> to vector<8x8xf32>
    %77 = vector.broadcast %53 : vector<1x8xf32> to vector<8x8xf32>
    %78 = arith.mulf %76, %77 : vector<8x8xf32>
    %79 = arith.addf %75, %78 : vector<8x8xf32>
    %80 = vector.broadcast %72 : vector<8x1xf32> to vector<8x8xf32>
    %81 = arith.mulf %79, %80 : vector<8x8xf32>
    %82 = arith.truncf %81 : vector<8x8xf32> to vector<8x8xbf16>
    %c1 = arith.constant 1 : index
    %c0_25 = arith.constant 0 : index
    %c0_26 = arith.constant 0 : index
    %83 = vector.load %arg6[%c1, %c0_25, %c0_26] : memref<4x8x32xbf16, #tpu.memory_space<vmem>>, vector<1x8x32xbf16>
    %84 = vector.shape_cast %83 : vector<1x8x32xbf16> to vector<8x32xbf16>
    %cst_27 = arith.constant dense<0.000000e+00> : vector<8x32xf32>
    %85 = tpu.matmul %82, %84, %cst_27 {dimension_numbers = #tpu.dot_dimension_numbers<[1], [0], [0], [1], [0, 0, 1, 1], [], []>} : vector<8x8xbf16>, vector<8x32xbf16>, vector<8x32xf32> -> vector<8x32xf32>
    %86 = arith.addf %48, %85 : vector<8x32xf32>
    %87 = vector.extract_strided_slice %7 {offsets = [0, 16], sizes = [8, 8], strides = [1, 1]} : vector<8x96xf32> to vector<8x8xf32>
    %88 = vector.extract_strided_slice %7 {offsets = [0, 48], sizes = [8, 8], strides = [1, 1]} : vector<8x96xf32> to vector<8x8xf32>
    %89 = vector.extract_strided_slice %7 {offsets = [0, 80], sizes = [8, 8], strides = [1, 1]} : vector<8x96xf32> to vector<8x8xf32>
    %90 = vector.extract_strided_slice %8 {offsets = [0, 16], sizes = [1, 8], strides = [1, 1]} : vector<1x32xf32> to vector<1x8xf32>
    %91 = vector.extract_strided_slice %9 {offsets = [0, 16], sizes = [1, 8], strides = [1, 1]} : vector<1x32xf32> to vector<1x8xf32>
    %92 = arith.truncf %87 : vector<8x8xf32> to vector<8x8xbf16>
    %93 = arith.truncf %88 : vector<8x8xf32> to vector<8x8xbf16>
    %cst_28 = arith.constant dense<0.000000e+00> : vector<8x8xf32>
    %94 = tpu.matmul %92, %93, %cst_28 {dimension_numbers = #tpu.dot_dimension_numbers<[1], [1], [0], [0], [0, 0, 1, 0], [], []>} : vector<8x8xbf16>, vector<8x8xbf16>, vector<8x8xf32> -> vector<8x8xf32>
    %95 = vector.broadcast %90 : vector<1x8xf32> to vector<8x8xf32>
    %96 = arith.mulf %87, %95 : vector<8x8xf32>
    %cst_29 = arith.constant dense<0.000000e+00> : vector<8xf32>
    %97 = vector.multi_reduction <add>, %96, %cst_29 [1] : vector<8x8xf32> to vector<8xf32>
    %98 = vector.shape_cast %97 : vector<8xf32> to vector<8x1xf32>
    %cst_30 = arith.constant dense<0xFF800000> : vector<8xf32>
    %99 = vector.multi_reduction <maximumf>, %94, %cst_30 [1] : vector<8x8xf32> to vector<8xf32>
    %100 = vector.shape_cast %99 : vector<8xf32> to vector<8x1xf32>
    %101 = arith.maximumf %100, %98 : vector<8x1xf32>
    %102 = vector.broadcast %101 : vector<8x1xf32> to vector<8x8xf32>
    %103 = arith.subf %94, %102 : vector<8x8xf32>
    %104 = math.exp %103 : vector<8x8xf32>
    %105 = arith.subf %98, %101 : vector<8x1xf32>
    %106 = math.exp %105 : vector<8x1xf32>
    %cst_31 = arith.constant dense<0.000000e+00> : vector<8xf32>
    %107 = vector.multi_reduction <add>, %104, %cst_31 [1] : vector<8x8xf32> to vector<8xf32>
    %108 = vector.shape_cast %107 : vector<8xf32> to vector<8x1xf32>
    %109 = arith.addf %108, %106 : vector<8x1xf32>
    %110 = tpu.reciprocal %109 {approx = true} : vector<8x1xf32> -> vector<8x1xf32>
    %111 = arith.truncf %104 : vector<8x8xf32> to vector<8x8xbf16>
    %112 = arith.truncf %89 : vector<8x8xf32> to vector<8x8xbf16>
    %cst_32 = arith.constant dense<0.000000e+00> : vector<8x8xf32>
    %113 = tpu.matmul %111, %112, %cst_32 {dimension_numbers = #tpu.dot_dimension_numbers<[1], [0], [0], [1], [0, 0, 1, 1], [], []>} : vector<8x8xbf16>, vector<8x8xbf16>, vector<8x8xf32> -> vector<8x8xf32>
    %114 = vector.broadcast %106 : vector<8x1xf32> to vector<8x8xf32>
    %115 = vector.broadcast %91 : vector<1x8xf32> to vector<8x8xf32>
    %116 = arith.mulf %114, %115 : vector<8x8xf32>
    %117 = arith.addf %113, %116 : vector<8x8xf32>
    %118 = vector.broadcast %110 : vector<8x1xf32> to vector<8x8xf32>
    %119 = arith.mulf %117, %118 : vector<8x8xf32>
    %120 = arith.truncf %119 : vector<8x8xf32> to vector<8x8xbf16>
    %c2 = arith.constant 2 : index
    %c0_33 = arith.constant 0 : index
    %c0_34 = arith.constant 0 : index
    %121 = vector.load %arg6[%c2, %c0_33, %c0_34] : memref<4x8x32xbf16, #tpu.memory_space<vmem>>, vector<1x8x32xbf16>
    %122 = vector.shape_cast %121 : vector<1x8x32xbf16> to vector<8x32xbf16>
    %cst_35 = arith.constant dense<0.000000e+00> : vector<8x32xf32>
    %123 = tpu.matmul %120, %122, %cst_35 {dimension_numbers = #tpu.dot_dimension_numbers<[1], [0], [0], [1], [0, 0, 1, 1], [], []>} : vector<8x8xbf16>, vector<8x32xbf16>, vector<8x32xf32> -> vector<8x32xf32>
    %124 = arith.addf %86, %123 : vector<8x32xf32>
    %125 = vector.extract_strided_slice %7 {offsets = [0, 24], sizes = [8, 8], strides = [1, 1]} : vector<8x96xf32> to vector<8x8xf32>
    %126 = vector.extract_strided_slice %7 {offsets = [0, 56], sizes = [8, 8], strides = [1, 1]} : vector<8x96xf32> to vector<8x8xf32>
    %127 = vector.extract_strided_slice %7 {offsets = [0, 88], sizes = [8, 8], strides = [1, 1]} : vector<8x96xf32> to vector<8x8xf32>
    %128 = vector.extract_strided_slice %8 {offsets = [0, 24], sizes = [1, 8], strides = [1, 1]} : vector<1x32xf32> to vector<1x8xf32>
    %129 = vector.extract_strided_slice %9 {offsets = [0, 24], sizes = [1, 8], strides = [1, 1]} : vector<1x32xf32> to vector<1x8xf32>
    %130 = arith.truncf %125 : vector<8x8xf32> to vector<8x8xbf16>
    %131 = arith.truncf %126 : vector<8x8xf32> to vector<8x8xbf16>
    %cst_36 = arith.constant dense<0.000000e+00> : vector<8x8xf32>
    %132 = tpu.matmul %130, %131, %cst_36 {dimension_numbers = #tpu.dot_dimension_numbers<[1], [1], [0], [0], [0, 0, 1, 0], [], []>} : vector<8x8xbf16>, vector<8x8xbf16>, vector<8x8xf32> -> vector<8x8xf32>
    %133 = vector.broadcast %128 : vector<1x8xf32> to vector<8x8xf32>
    %134 = arith.mulf %125, %133 : vector<8x8xf32>
    %cst_37 = arith.constant dense<0.000000e+00> : vector<8xf32>
    %135 = vector.multi_reduction <add>, %134, %cst_37 [1] : vector<8x8xf32> to vector<8xf32>
    %136 = vector.shape_cast %135 : vector<8xf32> to vector<8x1xf32>
    %cst_38 = arith.constant dense<0xFF800000> : vector<8xf32>
    %137 = vector.multi_reduction <maximumf>, %132, %cst_38 [1] : vector<8x8xf32> to vector<8xf32>
    %138 = vector.shape_cast %137 : vector<8xf32> to vector<8x1xf32>
    %139 = arith.maximumf %138, %136 : vector<8x1xf32>
    %140 = vector.broadcast %139 : vector<8x1xf32> to vector<8x8xf32>
    %141 = arith.subf %132, %140 : vector<8x8xf32>
    %142 = math.exp %141 : vector<8x8xf32>
    %143 = arith.subf %136, %139 : vector<8x1xf32>
    %144 = math.exp %143 : vector<8x1xf32>
    %cst_39 = arith.constant dense<0.000000e+00> : vector<8xf32>
    %145 = vector.multi_reduction <add>, %142, %cst_39 [1] : vector<8x8xf32> to vector<8xf32>
    %146 = vector.shape_cast %145 : vector<8xf32> to vector<8x1xf32>
    %147 = arith.addf %146, %144 : vector<8x1xf32>
    %148 = tpu.reciprocal %147 {approx = true} : vector<8x1xf32> -> vector<8x1xf32>
    %149 = arith.truncf %142 : vector<8x8xf32> to vector<8x8xbf16>
    %150 = arith.truncf %127 : vector<8x8xf32> to vector<8x8xbf16>
    %cst_40 = arith.constant dense<0.000000e+00> : vector<8x8xf32>
    %151 = tpu.matmul %149, %150, %cst_40 {dimension_numbers = #tpu.dot_dimension_numbers<[1], [0], [0], [1], [0, 0, 1, 1], [], []>} : vector<8x8xbf16>, vector<8x8xbf16>, vector<8x8xf32> -> vector<8x8xf32>
    %152 = vector.broadcast %144 : vector<8x1xf32> to vector<8x8xf32>
    %153 = vector.broadcast %129 : vector<1x8xf32> to vector<8x8xf32>
    %154 = arith.mulf %152, %153 : vector<8x8xf32>
    %155 = arith.addf %151, %154 : vector<8x8xf32>
    %156 = vector.broadcast %148 : vector<8x1xf32> to vector<8x8xf32>
    %157 = arith.mulf %155, %156 : vector<8x8xf32>
    %158 = arith.truncf %157 : vector<8x8xf32> to vector<8x8xbf16>
    %c3 = arith.constant 3 : index
    %c0_41 = arith.constant 0 : index
    %c0_42 = arith.constant 0 : index
    %159 = vector.load %arg6[%c3, %c0_41, %c0_42] : memref<4x8x32xbf16, #tpu.memory_space<vmem>>, vector<1x8x32xbf16>
    %160 = vector.shape_cast %159 : vector<1x8x32xbf16> to vector<8x32xbf16>
    %cst_43 = arith.constant dense<0.000000e+00> : vector<8x32xf32>
    %161 = tpu.matmul %158, %160, %cst_43 {dimension_numbers = #tpu.dot_dimension_numbers<[1], [0], [0], [1], [0, 0, 1, 1], [], []>} : vector<8x8xbf16>, vector<8x32xbf16>, vector<8x32xf32> -> vector<8x32xf32>
    %162 = arith.addf %124, %161 : vector<8x32xf32>
    %c0_44 = arith.constant 0 : index
    %c0_45 = arith.constant 0 : index
    %163 = vector.load %arg7[%c0_44, %c0_45] : memref<1x32xf32, #tpu.memory_space<vmem>>, vector<1x32xf32>
    %164 = vector.broadcast %163 : vector<1x32xf32> to vector<8x32xf32>
    %165 = arith.addf %162, %164 : vector<8x32xf32>
    %166 = arith.addf %1, %165 : vector<8x32xf32>
    %c0_46 = arith.constant 0 : index
    %c0_47 = arith.constant 0 : index
    %167 = vector.load %arg12[%c0_46, %c0_47] : memref<1x32xf32, #tpu.memory_space<vmem>>, vector<1x32xf32>
    %c0_48 = arith.constant 0 : index
    %c0_49 = arith.constant 0 : index
    %168 = vector.load %arg13[%c0_48, %c0_49] : memref<1x32xf32, #tpu.memory_space<vmem>>, vector<1x32xf32>
    %cst_50 = arith.constant dense<0.000000e+00> : vector<8xf32>
    %169 = vector.multi_reduction <add>, %166, %cst_50 [1] : vector<8x32xf32> to vector<8xf32>
    %170 = vector.shape_cast %169 : vector<8xf32> to vector<8x1xf32>
    %cst_51 = arith.constant 3.200000e+01 : f32
    %171 = vector.broadcast %cst_51 : f32 to vector<8x1xf32>
    %172 = arith.divf %170, %171 : vector<8x1xf32>
    %173 = vector.broadcast %172 : vector<8x1xf32> to vector<8x32xf32>
    %174 = arith.subf %166, %173 : vector<8x32xf32>
    %175 = arith.mulf %174, %174 : vector<8x32xf32>
    %cst_52 = arith.constant dense<0.000000e+00> : vector<8xf32>
    %176 = vector.multi_reduction <add>, %175, %cst_52 [1] : vector<8x32xf32> to vector<8xf32>
    %177 = vector.shape_cast %176 : vector<8xf32> to vector<8x1xf32>
    %cst_53 = arith.constant 3.200000e+01 : f32
    %178 = vector.broadcast %cst_53 : f32 to vector<8x1xf32>
    %179 = arith.divf %177, %178 : vector<8x1xf32>
    %180 = vector.broadcast %172 : vector<8x1xf32> to vector<8x32xf32>
    %181 = arith.subf %166, %180 : vector<8x32xf32>
    %cst_54 = arith.constant 9.99999974E-6 : f32
    %182 = vector.broadcast %cst_54 : f32 to vector<8x1xf32>
    %183 = arith.addf %179, %182 : vector<8x1xf32>
    %184 = math.rsqrt %183 : vector<8x1xf32>
    %185 = vector.broadcast %184 : vector<8x1xf32> to vector<8x32xf32>
    %186 = arith.mulf %181, %185 : vector<8x32xf32>
    %187 = vector.broadcast %167 : vector<1x32xf32> to vector<8x32xf32>
    %188 = arith.mulf %186, %187 : vector<8x32xf32>
    %189 = vector.broadcast %168 : vector<1x32xf32> to vector<8x32xf32>
    %190 = arith.addf %188, %189 : vector<8x32xf32>
    %191 = arith.truncf %190 : vector<8x32xf32> to vector<8x32xbf16>
    %c0_55 = arith.constant 0 : index
    %c0_56 = arith.constant 0 : index
    %192 = vector.load %arg8[%c0_55, %c0_56] : memref<32x64xbf16, #tpu.memory_space<vmem>>, vector<32x64xbf16>
    %cst_57 = arith.constant dense<0.000000e+00> : vector<8x64xf32>
    %193 = tpu.matmul %191, %192, %cst_57 {dimension_numbers = #tpu.dot_dimension_numbers<[1], [0], [0], [1], [0, 0, 1, 1], [], []>} : vector<8x32xbf16>, vector<32x64xbf16>, vector<8x64xf32> -> vector<8x64xf32>
    %c0_58 = arith.constant 0 : index
    %c0_59 = arith.constant 0 : index
    %194 = vector.load %arg9[%c0_58, %c0_59] : memref<1x64xf32, #tpu.memory_space<vmem>>, vector<1x64xf32>
    %195 = vector.broadcast %194 : vector<1x64xf32> to vector<8x64xf32>
    %196 = arith.addf %193, %195 : vector<8x64xf32>
    %cst_60 = arith.constant 0.000000e+00 : f32
    %197 = vector.broadcast %cst_60 : f32 to vector<8x64xf32>
    %198 = arith.maximumf %196, %197 : vector<8x64xf32>
    %199 = arith.truncf %198 : vector<8x64xf32> to vector<8x64xbf16>
    %c0_61 = arith.constant 0 : index
    %c0_62 = arith.constant 0 : index
    %200 = vector.load %arg10[%c0_61, %c0_62] : memref<64x32xbf16, #tpu.memory_space<vmem>>, vector<64x32xbf16>
    %cst_63 = arith.constant dense<0.000000e+00> : vector<8x32xf32>
    %201 = tpu.matmul %199, %200, %cst_63 {dimension_numbers = #tpu.dot_dimension_numbers<[1], [0], [0], [1], [0, 0, 1, 1], [], []>} : vector<8x64xbf16>, vector<64x32xbf16>, vector<8x32xf32> -> vector<8x32xf32>
    %c0_64 = arith.constant 0 : index
    %c0_65 = arith.constant 0 : index
    %202 = vector.load %arg11[%c0_64, %c0_65] : memref<1x32xf32, #tpu.memory_space<vmem>>, vector<1x32xf32>
    %203 = vector.broadcast %202 : vector<1x32xf32> to vector<8x32xf32>
    %204 = arith.addf %201, %203 : vector<8x32xf32>
    %205 = arith.addf %204, %204 : vector<8x32xf32>
    %c0_66 = arith.constant 0 : index
    %c0_67 = arith.constant 0 : index
    %206 = vector.load %arg14[%c0_66, %c0_67] : memref<1x32xf32, #tpu.memory_space<vmem>>, vector<1x32xf32>
    %c0_68 = arith.constant 0 : index
    %c0_69 = arith.constant 0 : index
    %207 = vector.load %arg15[%c0_68, %c0_69] : memref<1x32xf32, #tpu.memory_space<vmem>>, vector<1x32xf32>
    %cst_70 = arith.constant dense<0.000000e+00> : vector<8xf32>
    %208 = vector.multi_reduction <add>, %205, %cst_70 [1] : vector<8x32xf32> to vector<8xf32>
    %209 = vector.shape_cast %208 : vector<8xf32> to vector<8x1xf32>
    %cst_71 = arith.constant 3.200000e+01 : f32
    %210 = vector.broadcast %cst_71 : f32 to vector<8x1xf32>
    %211 = arith.divf %209, %210 : vector<8x1xf32>
    %212 = vector.broadcast %211 : vector<8x1xf32> to vector<8x32xf32>
    %213 = arith.subf %205, %212 : vector<8x32xf32>
    %214 = arith.mulf %213, %213 : vector<8x32xf32>
    %cst_72 = arith.constant dense<0.000000e+00> : vector<8xf32>
    %215 = vector.multi_reduction <add>, %214, %cst_72 [1] : vector<8x32xf32> to vector<8xf32>
    %216 = vector.shape_cast %215 : vector<8xf32> to vector<8x1xf32>
    %cst_73 = arith.constant 3.200000e+01 : f32
    %217 = vector.broadcast %cst_73 : f32 to vector<8x1xf32>
    %218 = arith.divf %216, %217 : vector<8x1xf32>
    %219 = vector.broadcast %211 : vector<8x1xf32> to vector<8x32xf32>
    %220 = arith.subf %205, %219 : vector<8x32xf32>
    %cst_74 = arith.constant 9.99999974E-6 : f32
    %221 = vector.broadcast %cst_74 : f32 to vector<8x1xf32>
    %222 = arith.addf %218, %221 : vector<8x1xf32>
    %223 = math.rsqrt %222 : vector<8x1xf32>
    %224 = vector.broadcast %223 : vector<8x1xf32> to vector<8x32xf32>
    %225 = arith.mulf %220, %224 : vector<8x32xf32>
    %226 = vector.broadcast %206 : vector<1x32xf32> to vector<8x32xf32>
    %227 = arith.mulf %225, %226 : vector<8x32xf32>
    %228 = vector.broadcast %207 : vector<1x32xf32> to vector<8x32xf32>
    %229 = arith.addf %227, %228 : vector<8x32xf32>
    %c0_75 = arith.constant 0 : index
    %c0_76 = arith.constant 0 : index
    %c0_77 = arith.constant 0 : index
    %230 = vector.load %arg16[%c0_75, %c0_76, %c0_77] : memref<1x8x32xf32, #tpu.memory_space<vmem>>, vector<1x8x32xf32>
    %231 = vector.shape_cast %230 : vector<1x8x32xf32> to vector<8x32xf32>
    %232 = vector.shape_cast %229 : vector<8x32xf32> to vector<1x8x32xf32>
    tpu.vector_store %arg16[%c0_75, %c0_76, %c0_77], %232 {strides = array<i32>} : memref<1x8x32xf32, #tpu.memory_space<vmem>>, vector<1x8x32xf32>,
    return
  }
  func.func @transform_0(%arg0: i32) -> (i32, i32, i32) {
    %c0_i32 = arith.constant 0 : i32
    %c0_i32_0 = arith.constant 0 : i32
    %c0_i32_1 = arith.constant 0 : i32
    return %arg0, %c0_i32, %c0_i32_0 : i32, i32, i32
  }
  func.func @transform_1(%arg0: i32) -> (i32, i32) {
    %c0_i32 = arith.constant 0 : i32
    %c0_i32_0 = arith.constant 0 : i32
    %c0_i32_1 = arith.constant 0 : i32
    return %c0_i32, %c0_i32_0 : i32, i32
  }
  func.func @transform_2(%arg0: i32) -> (i32, i32) {
    %c0_i32 = arith.constant 0 : i32
    %c0_i32_0 = arith.constant 0 : i32
    %c0_i32_1 = arith.constant 0 : i32
    return %c0_i32, %c0_i32_0 : i32, i32
  }
  func.func @transform_3(%arg0: i32) -> (i32, i32) {
    %c0_i32 = arith.constant 0 : i32
    %c0_i32_0 = arith.constant 0 : i32
    %c0_i32_1 = arith.constant 0 : i32
    return %c0_i32, %c0_i32_0 : i32, i32
  }
  func.func @transform_4(%arg0: i32) -> (i32, i32) {
    %c0_i32 = arith.constant 0 : i32
    %c0_i32_0 = arith.constant 0 : i32
    %c0_i32_1 = arith.constant 0 : i32
    return %c0_i32, %c0_i32_0 : i32, i32
  }
  func.func @transform_5(%arg0: i32) -> (i32, i32, i32) {
    %c0_i32 = arith.constant 0 : i32
    %c0_i32_0 = arith.constant 0 : i32
    %c0_i32_1 = arith.constant 0 : i32
    %c0_i32_2 = arith.constant 0 : i32
    return %c0_i32, %c0_i32_0, %c0_i32_1 : i32, i32, i32
  }
  func.func @transform_6(%arg0: i32) -> (i32, i32) {
    %c0_i32 = arith.constant 0 : i32
    %c0_i32_0 = arith.constant 0 : i32
    %c0_i32_1 = arith.constant 0 : i32
    return %c0_i32, %c0_i32_0 : i32, i32
  }
  func.func @transform_7(%arg0: i32) -> (i32, i32) {
    %c0_i32 = arith.constant 0 : i32
    %c0_i32_0 = arith.constant 0 : i32
    %c0_i32_1 = arith.constant 0 : i32
    return %c0_i32, %c0_i32_0 : i32, i32
  }
  func.func @transform_8(%arg0: i32) -> (i32, i32) {
    %c0_i32 = arith.constant 0 : i32
    %c0_i32_0 = arith.constant 0 : i32
    %c0_i32_1 = arith.constant 0 : i32
    return %c0_i32, %c0_i32_0 : i32, i32
  }
  func.func @transform_9(%arg0: i32) -> (i32, i32) {
    %c0_i32 = arith.constant 0 : i32
    %c0_i32_0 = arith.constant 0 : i32
    %c0_i32_1 = arith.constant 0 : i32
    return %c0_i32, %c0_i32_0 : i32, i32
  }
  func.func @transform_10(%arg0: i32) -> (i32, i32) {
    %c0_i32 = arith.constant 0 : i32
    %c0_i32_0 = arith.constant 0 : i32
    %c0_i32_1 = arith.constant 0 : i32
    return %c0_i32, %c0_i32_0 : i32, i32
  }
  func.func @transform_11(%arg0: i32) -> (i32, i32) {
    %c0_i32 = arith.constant 0 : i32
    %c0_i32_0 = arith.constant 0 : i32
    %c0_i32_1 = arith.constant 0 : i32
    return %c0_i32, %c0_i32_0 : i32, i32
  }
  func.func @transform_12(%arg0: i32) -> (i32, i32) {
    %c0_i32 = arith.constant 0 : i32
    %c0_i32_0 = arith.constant 0 : i32
    %c0_i32_1 = arith.constant 0 : i32
    return %c0_i32, %c0_i32_0 : i32, i32
  }
  func.func @transform_13(%arg0: i32) -> (i32, i32) {
    %c0_i32 = arith.constant 0 : i32
    %c0_i32_0 = arith.constant 0 : i32
    %c0_i32_1 = arith.constant 0 : i32
    return %c0_i32, %c0_i32_0 : i32, i32
  }
  func.func @transform_14(%arg0: i32) -> (i32, i32) {
    %c0_i32 = arith.constant 0 : i32
    %c0_i32_0 = arith.constant 0 : i32
    %c0_i32_1 = arith.constant 0 : i32
    return %c0_i32, %c0_i32_0 : i32, i32
  }
  func.func @transform_15(%arg0: i32) -> (i32, i32, i32) {
    %c0_i32 = arith.constant 0 : i32
    %c0_i32_0 = arith.constant 0 : i32
    %c0_i32_1 = arith.constant 0 : i32
    return %arg0, %c0_i32, %c0_i32_0 : i32, i32, i32
  }
}

</mosaic_0001>

<llo_original>
// kernel: tpu_custom_call.1
$region0: #{tpu_custom_call.1}
  #allocation0 [shape = 'u32[]', space=smem, size = 0x4, offset = 0x4, fixed_abs, tag = 'smem constant byte address 0x4 - core index']
  #allocation1 [shape = 'u32[144,128]{1,0:T(1,128)}', space=vmem, size = 0x12000, scoped, tag = 'internal scratch']
  %s0 = inlined_call_operand.vmem [shape: f32[2,8,32], index: 0, kind: input, shape index: {}]
  %s1 = inlined_call_operand.vmem [shape: bf16[32,96], index: 1, kind: input, shape index: {}]
  %s2 = inlined_call_operand.hbm [shape: f32[1,96], index: 2, kind: input, shape index: {}]
  %s3 = inlined_call_operand.hbm [shape: f32[1,32], index: 3, kind: input, shape index: {}]
  %s4 = inlined_call_operand.hbm [shape: f32[1,32], index: 4, kind: input, shape index: {}]
  %s5 = inlined_call_operand.vmem [shape: bf16[4,8,32], index: 5, kind: input, shape index: {}]
  %s6 = inlined_call_operand.hbm [shape: f32[1,32], index: 6, kind: input, shape index: {}]
  %s7 = inlined_call_operand.hbm [shape: bf16[32,64], index: 7, kind: input, shape index: {}]
  %s8 = inlined_call_operand.hbm [shape: f32[1,64], index: 8, kind: input, shape index: {}]
  %s9 = inlined_call_operand.vmem [shape: bf16[64,32], index: 9, kind: input, shape index: {}]
  %s10 = inlined_call_operand.vmem [shape: f32[1,32], index: 10, kind: input, shape index: {}]
  %s11 = inlined_call_operand.vmem [shape: f32[1,32], index: 11, kind: input, shape index: {}]
  %s12 = inlined_call_operand.vmem [shape: f32[1,32], index: 12, kind: input, shape index: {}]
  %s13 = inlined_call_operand.vmem [shape: f32[1,32], index: 13, kind: input, shape index: {}]
  %s14 = inlined_call_operand.vmem [shape: f32[1,32], index: 14, kind: input, shape index: {}]
  %s15 = inlined_call_operand.hbm [shape: f32[2,8,32], index: 15, kind: output, shape index: {}]
  %s16 = sld [smem:[#allocation0]]
  $region117: #{tpu_custom_call.1} parent=0
    _
  %s18 = ssub.s32 1, %s16
  %s19 = scalar_select 0, %s18, %s16
  $region1: #{tpu_custom_call.1} parent=0
    #allocation2 [shape = 'u8[512]{0}', space=vmem, size = 0x400, scoped, tag = 'input window, operand 2, single buffered']
    #allocation3 [shape = 's32[2]{0}', space=sflag, size = 0x8, scoped, tag = 'scoped memory for tpu_custom_call.1']
    #allocation4 [shape = 's32[2]{0}', space=sflag, size = 0x8, scoped, tag = 'scoped memory for tpu_custom_call.1']
    #allocation5 [shape = 'u8[512]{0}', space=vmem, size = 0x400, scoped, tag = 'input window, operand 3, single buffered']
    #allocation6 [shape = 's32[1]{0}', space=sflag, size = 0x4, scoped, tag = 'scoped memory for tpu_custom_call.1']
    #allocation7 [shape = 'u8[512]{0}', space=vmem, size = 0x400, scoped, tag = 'input window, operand 4, single buffered']
    #allocation8 [shape = 'u8[512]{0}', space=vmem, size = 0x400, scoped, tag = 'input window, operand 6, single buffered']
    #allocation9 [shape = 's32[1]{0}', space=sflag, size = 0x4, scoped, tag = 'scoped memory for tpu_custom_call.1']
    #allocation10 [shape = 'u8[8192]{0}', space=vmem, size = 0x2000, scoped, tag = 'input window, operand 7, single buffered']
    #allocation11 [shape = 'u8[512]{0}', space=vmem, size = 0x400, scoped, tag = 'input window, operand 8, single buffered']
    #allocation12 [shape = 's32[1]{0}', space=sflag, size = 0x4, scoped, tag = 'scoped memory for tpu_custom_call.1']
    #allocation13 [shape = 'u8[8192]{0}', space=vmem, size = 0x2000, scoped, tag = 'output window, operand 0']
    %20 = vsyncpa [#allocation3], 0
    %21 = vsyncpa [#allocation6], 0
    %22 = vsyncpa [#allocation9], 0
    %23 = vsyncpa [#allocation12], 0
    %24 = vsyncpa [#allocation4], 0
    %s25 = scalar_lea.sflag [#allocation4], 1
    %26 = vsyncpa %s25, 0
    loop: start=0, step=1, limit=4
    $region2: #{tpu_custom_call.1} parent=1 // loop_pre_header
      _
    $region3: #{tpu_custom_call.1} parent=1 // loop_header
      %s28 = sphi 0, %s32
      %p29 = scmp.ge.s32.totalorder %s28, 4
      %s38 = sphi 0, %s40
      %s41 = sphi 0, %s38
      %s42 = sphi 0, %s41
      %s58 = sphi 0, %s42
      %s62 = sphi 0, %s62
      %s64 = sphi 0, %s62
      %s65 = sphi 0, %s64
      %s79 = sphi 0, %s65
      %s83 = sphi 0, %s83
      %s85 = sphi 0, %s83
      %s86 = sphi 0, %s85
      %s100 = sphi 0, %s86
      %s104 = sphi 0, %s104
      %s106 = sphi 0, %s104
      %s107 = sphi 0, %s106
      %s121 = sphi 0, %s107
      %s125 = sphi 0, %s125
      %s127 = sphi 0, %s125
      %s128 = sphi 0, %s127
      %s142 = sphi 0, %s128
      %s146 = sphi 0, %s146
      %s148 = sphi 0, %s146
      %s149 = sphi 0, %s148
      %s163 = sphi 0, %s149
      %s167 = sphi 0, %s167
      %s169 = sphi 0, %s167
      %s170 = sphi 0, %s169
      %s184 = sphi 0, %s170
      %s188 = sphi 0, %s188
      %s190 = sphi 0, %s188
      %s191 = sphi 0, %s190
      %s205 = sphi 0, %s191
      %s209 = sphi 0, %s209
      %s211 = sphi 0, %s209
      %s212 = sphi 0, %s211
      %s226 = sphi 0, %s212
      %s230 = sphi 0, %s230
      %s232 = sphi 0, %s230
      %s233 = sphi 0, %s232
      %s247 = sphi 0, %s233
      %s251 = sphi 0, %s251
      %s253 = sphi 0, %s251
      %s254 = sphi 0, %s253
      %s268 = sphi 0, %s254
      %s272 = sphi 0, %s272
      %s274 = sphi 0, %s272
      %s275 = sphi 0, %s274
      %s289 = sphi 0, %s275
      %s293 = sphi 0, %s293
      %s295 = sphi 0, %s293
      %s296 = sphi 0, %s295
      %s310 = sphi 0, %s296
      %s314 = sphi 0, %s314
      %s316 = sphi 0, %s314
      %s317 = sphi 0, %s316
      %s331 = sphi 0, %s317
      %s335 = sphi 0, %s335
      %s337 = sphi 0, %s335
      %s338 = sphi 0, %s337
      %s352 = sphi 0, %s338
      %s358 = sphi 0, %s360
      %s361 = sphi 0, %s358
      %s362 = sphi 0, %s361
      %s378 = sphi 0, %s362
    $region4: #{tpu_custom_call.1} parent=1 // loop_header_branch
      %31 = sbr.rel (%p29) target = $region8
    $region5: #{tpu_custom_call.1} parent=1 // loop_body
      %s33 = ssub.s32 %s28, 1
      %s34 = ssub.s32 %s28, 2
      %s35 = sadd.s32 %s28, 1
      %s36 = ssub.s32 %s28, %s35
      %p37 = scmp.eq.s32.totalorder %s36, 0
      %s39 = sadd.s32 %s38, 1
      %s40 = scalar_select %p37, %s38, %s39
      %p43 = pneg %p37
      %p44 = scmp.eq.s32.totalorder %s28, 1
      %p45 = por %p43, %p44
      %p46 = scmp.ne.s32.totalorder %s38, %s41
      %p47 = scmp.eq.s32.totalorder %s28, 0
      %p48 = por %p46, %p47
      %p49 = scmp.ne.s32.totalorder %s38, %s41
      %p50 = scmp.eq.s32.totalorder %s33, 1
      %p51 = por %p49, %p50
      %p52 = scmp.ne.s32.totalorder %s41, %s42
      %p53 = scmp.eq.s32.totalorder %s33, 0
      %p54 = por %p52, %p53
      %p55 = scmp.ne.s32.totalorder %s41, %s42
      %p56 = scmp.eq.s32.totalorder %s34, 1
      %p57 = por %p55, %p56
      %p59 = scmp.ne.s32.totalorder %s42, %s58
      %p60 = scmp.eq.s32.totalorder %s34, 0
      %p61 = por %p59, %p60
      %s63 = sadd.s32 %s62, 1
      %p66 = scmp.eq.s32.totalorder %s28, 1
      %p67 = scmp.ne.s32.totalorder %s62, %s64
      %p68 = scmp.eq.s32.totalorder %s28, 0
      %p69 = por %p67, %p68
      %p70 = scmp.ne.s32.totalorder %s62, %s64
      %p71 = scmp.eq.s32.totalorder %s33, 1
      %p72 = por %p70, %p71
      %p73 = scmp.ne.s32.totalorder %s64, %s65
      %p74 = scmp.eq.s32.totalorder %s33, 0
      %p75 = por %p73, %p74
      %p76 = scmp.ne.s32.totalorder %s64, %s65
      %p77 = scmp.eq.s32.totalorder %s34, 1
      %p78 = por %p76, %p77
      %p80 = scmp.ne.s32.totalorder %s65, %s79
      %p81 = scmp.eq.s32.totalorder %s34, 0
      %p82 = por %p80, %p81
      %s84 = sadd.s32 %s83, 1
      %p87 = scmp.eq.s32.totalorder %s28, 1
      %p88 = scmp.ne.s32.totalorder %s83, %s85
      %p89 = scmp.eq.s32.totalorder %s28, 0
      %p90 = por %p88, %p89
      %p91 = scmp.ne.s32.totalorder %s83, %s85
      %p92 = scmp.eq.s32.totalorder %s33, 1
      %p93 = por %p91, %p92
      %p94 = scmp.ne.s32.totalorder %s85, %s86
      %p95 = scmp.eq.s32.totalorder %s33, 0
      %p96 = por %p94, %p95
      %p97 = scmp.ne.s32.totalorder %s85, %s86
      %p98 = scmp.eq.s32.totalorder %s34, 1
      %p99 = por %p97, %p98
      %p101 = scmp.ne.s32.totalorder %s86, %s100
      %p102 = scmp.eq.s32.totalorder %s34, 0
      %p103 = por %p101, %p102
      %s105 = sadd.s32 %s104, 1
      %p108 = scmp.eq.s32.totalorder %s28, 1
      %p109 = scmp.ne.s32.totalorder %s104, %s106
      %p110 = scmp.eq.s32.totalorder %s28, 0
      %p111 = por %p109, %p110
      %p112 = scmp.ne.s32.totalorder %s104, %s106
      %p113 = scmp.eq.s32.totalorder %s33, 1
      %p114 = por %p112, %p113
      %p115 = scmp.ne.s32.totalorder %s106, %s107
      %p116 = scmp.eq.s32.totalorder %s33, 0
      %p117 = por %p115, %p116
      %p118 = scmp.ne.s32.totalorder %s106, %s107
      %p119 = scmp.eq.s32.totalorder %s34, 1
      %p120 = por %p118, %p119
      %p122 = scmp.ne.s32.totalorder %s107, %s121
      %p123 = scmp.eq.s32.totalorder %s34, 0
      %p124 = por %p122, %p123
      %s126 = sadd.s32 %s125, 1
      %p129 = scmp.eq.s32.totalorder %s28, 1
      %p130 = scmp.ne.s32.totalorder %s125, %s127
      %p131 = scmp.eq.s32.totalorder %s28, 0
      %p132 = por %p130, %p131
      %p133 = scmp.ne.s32.totalorder %s125, %s127
      %p134 = scmp.eq.s32.totalorder %s33, 1
      %p135 = por %p133, %p134
      %p136 = scmp.ne.s32.totalorder %s127, %s128
      %p137 = scmp.eq.s32.totalorder %s33, 0
      %p138 = por %p136, %p137
      %p139 = scmp.ne.s32.totalorder %s127, %s128
      %p140 = scmp.eq.s32.totalorder %s34, 1
      %p141 = por %p139, %p140
      %p143 = scmp.ne.s32.totalorder %s128, %s142
      %p144 = scmp.eq.s32.totalorder %s34, 0
      %p145 = por %p143, %p144
      %s147 = sadd.s32 %s146, 1
      %p150 = scmp.eq.s32.totalorder %s28, 1
      %p151 = scmp.ne.s32.totalorder %s146, %s148
      %p152 = scmp.eq.s32.totalorder %s28, 0
      %p153 = por %p151, %p152
      %p154 = scmp.ne.s32.totalorder %s146, %s148
      %p155 = scmp.eq.s32.totalorder %s33, 1
      %p156 = por %p154, %p155
      %p157 = scmp.ne.s32.totalorder %s148, %s149
      %p158 = scmp.eq.s32.totalorder %s33, 0
      %p159 = por %p157, %p158
      %p160 = scmp.ne.s32.totalorder %s148, %s149
      %p161 = scmp.eq.s32.totalorder %s34, 1
      %p162 = por %p160, %p161
      %p164 = scmp.ne.s32.totalorder %s149, %s163
      %p165 = scmp.eq.s32.totalorder %s34, 0
      %p166 = por %p164, %p165
      %s168 = sadd.s32 %s167, 1
      %p171 = scmp.eq.s32.totalorder %s28, 1
      %p172 = scmp.ne.s32.totalorder %s167, %s169
      %p173 = scmp.eq.s32.totalorder %s28, 0
      %p174 = por %p172, %p173
      %p175 = scmp.ne.s32.totalorder %s167, %s169
      %p176 = scmp.eq.s32.totalorder %s33, 1
      %p177 = por %p175, %p176
      %p178 = scmp.ne.s32.totalorder %s169, %s170
      %p179 = scmp.eq.s32.totalorder %s33, 0
      %p180 = por %p178, %p179
      %p181 = scmp.ne.s32.totalorder %s169, %s170
      %p182 = scmp.eq.s32.totalorder %s34, 1
      %p183 = por %p181, %p182
      %p185 = scmp.ne.s32.totalorder %s170, %s184
      %p186 = scmp.eq.s32.totalorder %s34, 0
      %p187 = por %p185, %p186
      %s189 = sadd.s32 %s188, 1
      %p192 = scmp.eq.s32.totalorder %s28, 1
      %p193 = scmp.ne.s32.totalorder %s188, %s190
      %p194 = scmp.eq.s32.totalorder %s28, 0
      %p195 = por %p193, %p194
      %p196 = scmp.ne.s32.totalorder %s188, %s190
      %p197 = scmp.eq.s32.totalorder %s33, 1
      %p198 = por %p196, %p197
      %p199 = scmp.ne.s32.totalorder %s190, %s191
      %p200 = scmp.eq.s32.totalorder %s33, 0
      %p201 = por %p199, %p200
      %p202 = scmp.ne.s32.totalorder %s190, %s191
      %p203 = scmp.eq.s32.totalorder %s34, 1
      %p204 = por %p202, %p203
      %p206 = scmp.ne.s32.totalorder %s191, %s205
      %p207 = scmp.eq.s32.totalorder %s34, 0
      %p208 = por %p206, %p207
      %s210 = sadd.s32 %s209, 1
      %p213 = scmp.eq.s32.totalorder %s28, 1
      %p214 = scmp.ne.s32.totalorder %s209, %s211
      %p215 = scmp.eq.s32.totalorder %s28, 0
      %p216 = por %p214, %p215
      %p217 = scmp.ne.s32.totalorder %s209, %s211
      %p218 = scmp.eq.s32.totalorder %s33, 1
      %p219 = por %p217, %p218
      %p220 = scmp.ne.s32.totalorder %s211, %s212
      %p221 = scmp.eq.s32.totalorder %s33, 0
      %p222 = por %p220, %p221
      %p223 = scmp.ne.s32.totalorder %s211, %s212
      %p224 = scmp.eq.s32.totalorder %s34, 1
      %p225 = por %p223, %p224
      %p227 = scmp.ne.s32.totalorder %s212, %s226
      %p228 = scmp.eq.s32.totalorder %s34, 0
      %p229 = por %p227, %p228
      %s231 = sadd.s32 %s230, 1
      %p234 = scmp.eq.s32.totalorder %s28, 1
      %p235 = scmp.ne.s32.totalorder %s230, %s232
      %p236 = scmp.eq.s32.totalorder %s28, 0
      %p237 = por %p235, %p236
      %p238 = scmp.ne.s32.totalorder %s230, %s232
      %p239 = scmp.eq.s32.totalorder %s33, 1
      %p240 = por %p238, %p239
      %p241 = scmp.ne.s32.totalorder %s232, %s233
      %p242 = scmp.eq.s32.totalorder %s33, 0
      %p243 = por %p241, %p242
      %p244 = scmp.ne.s32.totalorder %s232, %s233
      %p245 = scmp.eq.s32.totalorder %s34, 1
      %p246 = por %p244, %p245
      %p248 = scmp.ne.s32.totalorder %s233, %s247
      %p249 = scmp.eq.s32.totalorder %s34, 0
      %p250 = por %p248, %p249
      %s252 = sadd.s32 %s251, 1
      %p255 = scmp.eq.s32.totalorder %s28, 1
      %p256 = scmp.ne.s32.totalorder %s251, %s253
      %p257 = scmp.eq.s32.totalorder %s28, 0
      %p258 = por %p256, %p257
      %p259 = scmp.ne.s32.totalorder %s251, %s253
      %p260 = scmp.eq.s32.totalorder %s33, 1
      %p261 = por %p259, %p260
      %p262 = scmp.ne.s32.totalorder %s253, %s254
      %p263 = scmp.eq.s32.totalorder %s33, 0
      %p264 = por %p262, %p263
      %p265 = scmp.ne.s32.totalorder %s253, %s254
      %p266 = scmp.eq.s32.totalorder %s34, 1
      %p267 = por %p265, %p266
      %p269 = scmp.ne.s32.totalorder %s254, %s268
      %p270 = scmp.eq.s32.totalorder %s34, 0
      %p271 = por %p269, %p270
      %s273 = sadd.s32 %s272, 1
      %p276 = scmp.eq.s32.totalorder %s28, 1
      %p277 = scmp.ne.s32.totalorder %s272, %s274
      %p278 = scmp.eq.s32.totalorder %s28, 0
      %p279 = por %p277, %p278
      %p280 = scmp.ne.s32.totalorder %s272, %s274
      %p281 = scmp.eq.s32.totalorder %s33, 1
      %p282 = por %p280, %p281
      %p283 = scmp.ne.s32.totalorder %s274, %s275
      %p284 = scmp.eq.s32.totalorder %s33, 0
      %p285 = por %p283, %p284
      %p286 = scmp.ne.s32.totalorder %s274, %s275
      %p287 = scmp.eq.s32.totalorder %s34, 1
      %p288 = por %p286, %p287
      %p290 = scmp.ne.s32.totalorder %s275, %s289
      %p291 = scmp.eq.s32.totalorder %s34, 0
      %p292 = por %p290, %p291
      %s294 = sadd.s32 %s293, 1
      %p297 = scmp.eq.s32.totalorder %s28, 1
      %p298 = scmp.ne.s32.totalorder %s293, %s295
      %p299 = scmp.eq.s32.totalorder %s28, 0
      %p300 = por %p298, %p299
      %p301 = scmp.ne.s32.totalorder %s293, %s295
      %p302 = scmp.eq.s32.totalorder %s33, 1
      %p303 = por %p301, %p302
      %p304 = scmp.ne.s32.totalorder %s295, %s296
      %p305 = scmp.eq.s32.totalorder %s33, 0
      %p306 = por %p304, %p305
      %p307 = scmp.ne.s32.totalorder %s295, %s296
      %p308 = scmp.eq.s32.totalorder %s34, 1
      %p309 = por %p307, %p308
      %p311 = scmp.ne.s32.totalorder %s296, %s310
      %p312 = scmp.eq.s32.totalorder %s34, 0
      %p313 = por %p311, %p312
      %s315 = sadd.s32 %s314, 1
      %p318 = scmp.eq.s32.totalorder %s28, 1
      %p319 = scmp.ne.s32.totalorder %s314, %s316
      %p320 = scmp.eq.s32.totalorder %s28, 0
      %p321 = por %p319, %p320
      %p322 = scmp.ne.s32.totalorder %s314, %s316
      %p323 = scmp.eq.s32.totalorder %s33, 1
      %p324 = por %p322, %p323
      %p325 = scmp.ne.s32.totalorder %s316, %s317
      %p326 = scmp.eq.s32.totalorder %s33, 0
      %p327 = por %p325, %p326
      %p328 = scmp.ne.s32.totalorder %s316, %s317
      %p329 = scmp.eq.s32.totalorder %s34, 1
      %p330 = por %p328, %p329
      %p332 = scmp.ne.s32.totalorder %s317, %s331
      %p333 = scmp.eq.s32.totalorder %s34, 0
      %p334 = por %p332, %p333
      %s336 = sadd.s32 %s335, 1
      %p339 = scmp.eq.s32.totalorder %s28, 1
      %p340 = scmp.ne.s32.totalorder %s335, %s337
      %p341 = scmp.eq.s32.totalorder %s28, 0
      %p342 = por %p340, %p341
      %p343 = scmp.ne.s32.totalorder %s335, %s337
      %p344 = scmp.eq.s32.totalorder %s33, 1
      %p345 = por %p343, %p344
      %p346 = scmp.ne.s32.totalorder %s337, %s338
      %p347 = scmp.eq.s32.totalorder %s33, 0
      %p348 = por %p346, %p347
      %p349 = scmp.ne.s32.totalorder %s337, %s338
      %p350 = scmp.eq.s32.totalorder %s34, 1
      %p351 = por %p349, %p350
      %p353 = scmp.ne.s32.totalorder %s338, %s352
      %p354 = scmp.eq.s32.totalorder %s34, 0
      %p355 = por %p353, %p354
      %s356 = ssub.s32 %s28, %s35
      %p357 = scmp.eq.s32.totalorder %s356, 0
      %s359 = sadd.s32 %s358, 1
      %s360 = scalar_select %p357, %s358, %s359
      %p363 = pneg %p357
      %p364 = scmp.eq.s32.totalorder %s28, 1
      %p365 = por %p363, %p364
      %p366 = scmp.ne.s32.totalorder %s358, %s361
      %p367 = scmp.eq.s32.totalorder %s28, 0
      %p368 = por %p366, %p367
      %p369 = scmp.ne.s32.totalorder %s358, %s361
      %p370 = scmp.eq.s32.totalorder %s33, 1
      %p371 = por %p369, %p370
      %p372 = scmp.ne.s32.totalorder %s361, %s362
      %p373 = scmp.eq.s32.totalorder %s33, 0
      %p374 = por %p372, %p373
      %p375 = scmp.ne.s32.totalorder %s361, %s362
      %p376 = scmp.eq.s32.totalorder %s34, 1
      %p377 = por %p375, %p376
      %p379 = scmp.ne.s32.totalorder %s362, %s378
      %p380 = scmp.eq.s32.totalorder %s34, 0
      %p381 = por %p379, %p380
      %p382 = scmp.le.s32.totalorder 1, %s28
      %p383 = scmp.lt.s32.totalorder %s28, 3
      %p384 = pnand %p382, %p383
      %p385 = pneg %p384
      // Predicated region
      $region9: #{tpu_custom_call.1} parent=5 // pred_check
        _
      $region10: #{tpu_custom_call.1} parent=5 // pred_check_branch
        %387 = sbr.rel (%p384) target = $region12
      $region11: #{tpu_custom_call.1} parent=5 // pred_region
        %s388 = ssub.s32 %s28, 1
        // Predicated region
        $region13: #{tpu_custom_call.1} parent=11 // pred_check
          %p389 = pneg %p75
        $region14: #{tpu_custom_call.1} parent=11 // pred_check_branch
          %391 = sbr.rel (%p389) target = $region16
        $region15: #{tpu_custom_call.1} parent=11 // pred_region
          _
        $region16: #{tpu_custom_call.1} parent=11 // pred_fallthru
          _
        // Predicated region
        $region17: #{tpu_custom_call.1} parent=11 // pred_check
          %p392 = pneg %p96
        $region18: #{tpu_custom_call.1} parent=11 // pred_check_branch
          %394 = sbr.rel (%p392) target = $region20
        $region19: #{tpu_custom_call.1} parent=11 // pred_region
          %s396 = ssub.s32 16, 16
          %397 = vsyncadd [#allocation3], %s396
          %s399 = sshll.u32 [#allocation2], 4
          %s400 = int_to_ptr.vmem [resolvable:$true] %s399
          %402 = dma.hbm_to_vmem [thread:$0]  %s2, 16, %s400, [#allocation3]
        $region20: #{tpu_custom_call.1} parent=11 // pred_fallthru
          _
        // Predicated region
        $region21: #{tpu_custom_call.1} parent=11 // pred_check
          %p403 = pneg %p117
        $region22: #{tpu_custom_call.1} parent=11 // pred_check_branch
          %405 = sbr.rel (%p403) target = $region24
        $region23: #{tpu_custom_call.1} parent=11 // pred_region
          %s407 = ssub.s32 16, 16
          %408 = vsyncadd [#allocation6], %s407
          %s410 = sshll.u32 [#allocation5], 4
          %s411 = int_to_ptr.vmem [resolvable:$true] %s410
          %413 = dma.hbm_to_vmem [thread:$0]  %s3, 16, %s411, [#allocation6]
        $region24: #{tpu_custom_call.1} parent=11 // pred_fallthru
          _
        // Predicated region
        $region25: #{tpu_custom_call.1} parent=11 // pred_check
          %p414 = pneg %p138
        $region26: #{tpu_custom_call.1} parent=11 // pred_check_branch
          %416 = sbr.rel (%p414) target = $region28
        $region27: #{tpu_custom_call.1} parent=11 // pred_region
          %s418 = ssub.s32 16, 16
          %419 = vsyncadd [#allocation6], %s418
          %s421 = sshll.u32 [#allocation7], 4
          %s422 = int_to_ptr.vmem [resolvable:$true] %s421
          %424 = dma.hbm_to_vmem [thread:$0]  %s4, 16, %s422, [#allocation6]
        $region28: #{tpu_custom_call.1} parent=11 // pred_fallthru
          _
        // Predicated region
        $region29: #{tpu_custom_call.1} parent=11 // pred_check
          %p425 = pneg %p159
        $region30: #{tpu_custom_call.1} parent=11 // pred_check_branch
          %427 = sbr.rel (%p425) target = $region32
        $region31: #{tpu_custom_call.1} parent=11 // pred_region
          _
        $region32: #{tpu_custom_call.1} parent=11 // pred_fallthru
          _
        // Predicated region
        $region33: #{tpu_custom_call.1} parent=11 // pred_check
          %p428 = pneg %p180
        $region34: #{tpu_custom_call.1} parent=11 // pred_check_branch
          %430 = sbr.rel (%p428) target = $region36
        $region35: #{tpu_custom_call.1} parent=11 // pred_region
          %s432 = ssub.s32 16, 16
          %433 = vsyncadd [#allocation9], %s432
          %s435 = sshll.u32 [#allocation8], 4
          %s436 = int_to_ptr.vmem [resolvable:$true] %s435
          %438 = dma.hbm_to_vmem [thread:$0]  %s6, 16, %s436, [#allocation9]
        $region36: #{tpu_custom_call.1} parent=11 // pred_fallthru
          _
        // Predicated region
        $region37: #{tpu_custom_call.1} parent=11 // pred_check
          %p439 = pneg %p201
        $region38: #{tpu_custom_call.1} parent=11 // pred_check_branch
          %441 = sbr.rel (%p439) target = $region40
        $region39: #{tpu_custom_call.1} parent=11 // pred_region
          %s443 = ssub.s32 256, 256
          %444 = vsyncadd [#allocation9], %s443
          %s445 = sshll.u32 [#allocation10], 4
          %s446 = int_to_ptr.vmem [resolvable:$true] %s445
          %451 = dma.hbm_to_vmem [thread:$0]  %s7, 256, %s446, [#allocation9], 64, 64, 4
        $region40: #{tpu_custom_call.1} parent=11 // pred_fallthru
          _
        // Predicated region
        $region41: #{tpu_custom_call.1} parent=11 // pred_check
          %p452 = pneg %p222
        $region42: #{tpu_custom_call.1} parent=11 // pred_check_branch
          %454 = sbr.rel (%p452) target = $region44
        $region43: #{tpu_custom_call.1} parent=11 // pred_region
          %s456 = ssub.s32 16, 16
          %457 = vsyncadd [#allocation12], %s456
          %s459 = sshll.u32 [#allocation11], 4
          %s460 = int_to_ptr.vmem [resolvable:$true] %s459
          %462 = dma.hbm_to_vmem [thread:$0]  %s8, 16, %s460, [#allocation12]
        $region44: #{tpu_custom_call.1} parent=11 // pred_fallthru
          _
        // Predicated region
        $region45: #{tpu_custom_call.1} parent=11 // pred_check
          %p463 = pneg %p243
        $region46: #{tpu_custom_call.1} parent=11 // pred_check_branch
          %465 = sbr.rel (%p463) target = $region48
        $region47: #{tpu_custom_call.1} parent=11 // pred_region
          _
        $region48: #{tpu_custom_call.1} parent=11 // pred_fallthru
          _
        // Predicated region
        $region49: #{tpu_custom_call.1} parent=11 // pred_check
          %p466 = pneg %p264
        $region50: #{tpu_custom_call.1} parent=11 // pred_check_branch
          %468 = sbr.rel (%p466) target = $region52
        $region51: #{tpu_custom_call.1} parent=11 // pred_region
          _
        $region52: #{tpu_custom_call.1} parent=11 // pred_fallthru
          _
        // Predicated region
        $region53: #{tpu_custom_call.1} parent=11 // pred_check
          %p469 = pneg %p285
        $region54: #{tpu_custom_call.1} parent=11 // pred_check_branch
          %471 = sbr.rel (%p469) target = $region56
        $region55: #{tpu_custom_call.1} parent=11 // pred_region
          _
        $region56: #{tpu_custom_call.1} parent=11 // pred_fallthru
          _
        // Predicated region
        $region57: #{tpu_custom_call.1} parent=11 // pred_check
          %p472 = pneg %p306
        $region58: #{tpu_custom_call.1} parent=11 // pred_check_branch
          %474 = sbr.rel (%p472) target = $region60
        $region59: #{tpu_custom_call.1} parent=11 // pred_region
          _
        $region60: #{tpu_custom_call.1} parent=11 // pred_fallthru
          _
        // Predicated region
        $region61: #{tpu_custom_call.1} parent=11 // pred_check
          %p475 = pneg %p327
        $region62: #{tpu_custom_call.1} parent=11 // pred_check_branch
          %477 = sbr.rel (%p475) target = $region64
        $region63: #{tpu_custom_call.1} parent=11 // pred_region
          _
        $region64: #{tpu_custom_call.1} parent=11 // pred_fallthru
          _
        // Predicated region
        $region65: #{tpu_custom_call.1} parent=11 // pred_check
          %p478 = pneg %p348
        $region66: #{tpu_custom_call.1} parent=11 // pred_check_branch
          %480 = sbr.rel (%p478) target = $region68
        $region67: #{tpu_custom_call.1} parent=11 // pred_region
          _
        $region68: #{tpu_custom_call.1} parent=11 // pred_fallthru
          _
      $region12: #{tpu_custom_call.1} parent=5 // pred_fallthru
        _
      %p481 = scmp.lt.s32.totalorder %s28, 2
      // Predicated region
      $region69: #{tpu_custom_call.1} parent=5 // pred_check
        %p482 = pneg %p481
      $region70: #{tpu_custom_call.1} parent=5 // pred_check_branch
        %484 = sbr.rel (%p482) target = $region72
      $region71: #{tpu_custom_call.1} parent=5 // pred_region
        // Predicated region
        $region73: #{tpu_custom_call.1} parent=71 // pred_check
          %p485 = pneg %p48
        $region74: #{tpu_custom_call.1} parent=71 // pred_check_branch
          %487 = sbr.rel (%p485) target = $region76
        $region75: #{tpu_custom_call.1} parent=71 // pred_region
          %p488 = scmp.lt.s32.totalorder %s28, 1
          %s489 = scalar_select %p488, %s28, 1
          %s490 = smul.addr %s489, 8
          %s491 = scalar_lea.vmem %s0, %s490
        $region76: #{tpu_custom_call.1} parent=71 // pred_fallthru
          _
      $region72: #{tpu_custom_call.1} parent=5 // pred_fallthru
        _
      %p492 = scmp.le.s32.totalorder 1, %s28
      %p493 = scmp.lt.s32.totalorder %s28, 3
      %p494 = pnand %p492, %p493
      %p495 = pneg %p494
      // Predicated region
      $region77: #{tpu_custom_call.1} parent=5 // pred_check
        _
      $region78: #{tpu_custom_call.1} parent=5 // pred_check_branch
        %497 = sbr.rel (%p494) target = $region80
      $region79: #{tpu_custom_call.1} parent=5 // pred_region
        %s498 = ssub.s32 %s28, 1
        // Predicated region
        $region81: #{tpu_custom_call.1} parent=79 // pred_check
          %p499 = pneg %p96
        $region82: #{tpu_custom_call.1} parent=79 // pred_check_branch
          %501 = sbr.rel (%p499) target = $region84
        $region83: #{tpu_custom_call.1} parent=79 // pred_region
          %502 = dma.done [#allocation3], 16
        $region84: #{tpu_custom_call.1} parent=79 // pred_fallthru
          _
        // Predicated region
        $region85: #{tpu_custom_call.1} parent=79 // pred_check
          %p503 = pneg %p117
        $region86: #{tpu_custom_call.1} parent=79 // pred_check_branch
          %505 = sbr.rel (%p503) target = $region88
        $region87: #{tpu_custom_call.1} parent=79 // pred_region
          %506 = dma.done [#allocation6], 16
        $region88: #{tpu_custom_call.1} parent=79 // pred_fallthru
          _
        // Predicated region
        $region89: #{tpu_custom_call.1} parent=79 // pred_check
          %p507 = pneg %p138
        $region90: #{tpu_custom_call.1} parent=79 // pred_check_branch
          %509 = sbr.rel (%p507) target = $region92
        $region91: #{tpu_custom_call.1} parent=79 // pred_region
          %510 = dma.done [#allocation6], 16
        $region92: #{tpu_custom_call.1} parent=79 // pred_fallthru
          _
        // Predicated region
        $region93: #{tpu_custom_call.1} parent=79 // pred_check
          %p511 = pneg %p180
        $region94: #{tpu_custom_call.1} parent=79 // pred_check_branch
          %513 = sbr.rel (%p511) target = $region96
        $region95: #{tpu_custom_call.1} parent=79 // pred_region
          %514 = dma.done [#allocation9], 16
        $region96: #{tpu_custom_call.1} parent=79 // pred_fallthru
          _
        // Predicated region
        $region97: #{tpu_custom_call.1} parent=79 // pred_check
          %p515 = pneg %p201
        $region98: #{tpu_custom_call.1} parent=79 // pred_check_branch
          %517 = sbr.rel (%p515) target = $region100
        $region99: #{tpu_custom_call.1} parent=79 // pred_region
          %518 = dma.done [#allocation9], 256
        $region100: #{tpu_custom_call.1} parent=79 // pred_fallthru
          _
        // Predicated region
        $region101: #{tpu_custom_call.1} parent=79 // pred_check
          %p519 = pneg %p222
        $region102: #{tpu_custom_call.1} parent=79 // pred_check_branch
          %521 = sbr.rel (%p519) target = $region104
        $region103: #{tpu_custom_call.1} parent=79 // pred_region
          %522 = dma.done [#allocation12], 16
        $region104: #{tpu_custom_call.1} parent=79 // pred_fallthru
          _
        %p523 = scmp.lt.s32.totalorder %s33, 1
        %s524 = scalar_select %p523, %s33, 1
        %s525 = smul.addr %s524, 8
        %s526 = scalar_lea.vmem %s0, %s525
        %p527 = pneg %p54
        %p528 = pneg %p51
        %p529 = pneg %p75
        %p530 = pneg %p72
        %p531 = pneg %p96
        %p532 = pneg %p93
        %p533 = pneg %p117
        %p534 = pneg %p114
        %p535 = pneg %p138
        %p536 = pneg %p135
        %p537 = pneg %p159
        %p538 = pneg %p156
        %p539 = pneg %p180
        %p540 = pneg %p177
        %p541 = pneg %p201
        %p542 = pneg %p198
        %p543 = pneg %p222
        %p544 = pneg %p219
        %p545 = pneg %p243
        %p546 = pneg %p240
        %p547 = pneg %p264
        %p548 = pneg %p261
        %p549 = pneg %p285
        %p550 = pneg %p282
        %p551 = pneg %p306
        %p552 = pneg %p303
        %p553 = pneg %p327
        %p554 = pneg %p324
        %p555 = pneg %p348
        %p556 = pneg %p345
        %p557 = pneg %p374
        %p558 = pneg %p371
        %s559 = sand.u32 %s361, 1
        %s560 = scalar_lea.sflag [#allocation4], %s559
        %s561 = sand.u32 %s361, 1
        %s562 = smul.addr %s561, 8
        %s563 = scalar_lea.vmem [#allocation13], %s562
        %p564 = scmp.lt.s32.totalorder %s33, 1
        %s565 = scalar_select %p564, %s33, 1
        %s566 = smul.addr %s565, 8
        %s567 = scalar_lea.vmem %s0, %s566
        %v569 = vld [vmem:[%s567] sm:$0xff]
        %v570 = vpack.c.bf16 %v569, %v569
        %v571 = vld [vmem:[%s1] sm:$0xf]
        %v572 = vld [vmem:[%s1 + $0x4] sm:$0xf]
        %v573 = vld [vmem:[%s1 + $0x8] sm:$0xf]
        %v574 = vld [vmem:[%s1 + $0xc] sm:$0xf]
        %v575 = vld [vmem:[#allocation2] sm:$0x1]
        %v577 = vlaneseq
        %v578 = vshrl.u32 %v577, 7
        %v579 = vsub.s32 0, %v578
        %v580 = vrot.slane %v575, %v579
        %v586 = vunpack.c.l.b16 %v571
        %v587 = vunpack.c.l.b16 %v572
        %v588 = vunpack.c.l.b16 %v573
        %v589 = vunpack.c.l.b16 %v574
        %v590 = vpack.c.b16 %v587, %v586
        %v591 = vpack.c.b16 %v589, %v588
        %vm594 = vcmask 261120
        %v596 = vsel %vm594, %v570, 0
        %598 = vmatprep.subr.bf16.mxu0 0
        %599 = vmatpush1.bf16.msra.mxu0 0
        %600 = vmatprep.subr.bf16.mxu0 0
        %601 = vmatpush1.bf16.msra.mxu0 0
        %602 = vmatprep.subr.bf16.mxu0 0
        %603 = vmatpush1.bf16.msra.mxu0 0
        %604 = vmatprep.subr.bf16.mxu0 0
        %605 = vmatpush1.bf16.msra.mxu0 0
        %606 = vmatprep.subr.bf16.mxu0 0
        %607 = vmatpush1.bf16.msra.mxu0 0
        %608 = vmatprep.subr.bf16.mxu0 0
        %609 = vmatpush1.bf16.msra.mxu0 0
        %610 = vmatprep.subr.bf16.mxu0 0
        %611 = vmatpush1.bf16.msra.mxu0 %v591
        %612 = vmatprep.subr.bf16.mxu0 0
        %613 = vmatpush1.bf16.msra.mxu0 %v590
        %614 = vmatprep.subr.bf16.mxu0 0
        %615 = vmatpush2.bf16.msra.mxu0 0
        %616 = vmatprep.subr.bf16.mxu0 0
        %617 = vmatpush2.bf16.msra.mxu0 0
        %618 = vmatprep.subr.bf16.mxu0 0
        %619 = vmatpush2.bf16.msra.mxu0 0
        %620 = vmatprep.subr.bf16.mxu0 0
        %621 = vmatpush2.bf16.msra.mxu0 0
        %622 = vmatprep.subr.bf16.mxu0 0
        %623 = vmatpush2.bf16.msra.mxu0 0
        %624 = vmatprep.subr.bf16.mxu0 0
        %625 = vmatpush2.bf16.msra.mxu0 0
        %626 = vmatprep.subr.bf16.mxu0 0
        %627 = vmatpush2.bf16.msra.mxu0 0
        %628 = vmatprep.subr.bf16.mxu0 0
        %629 = vmatpush2.bf16.msra.mxu0 0
        %630 = vmatprep.mubr.bf16.mxu0 0
        %631 = vmatmul.mubr.bf16.gmra.mxu0 %v596
        %v632 = vpop.f32.mrf.mxu0
        %v633 = vadd.f32 %v580, %v632
        %v634 = vpop.f32.mrf.mxu0
        %v635 = vpop.f32.mrf.mxu0
        %v636 = vpop.f32.mrf.mxu0
        %637 = vdwg.mxu0
        %v638 = vld [vmem:[#allocation5] sm:$0x1]
        %v639 = vld [vmem:[#allocation7] sm:$0x1]
        %v640 = vpack.c.bf16 %v633, %v633
        %642 = vrot.lane.b32.xlu0 %v640, 96
        %v643 = vpop.permute.xlu0 %642
        %vm644 = vcmask 64512
        %v646 = vsel %vm644, %v640, 0
        %v649 = vsel %vm644, %v643, 0
        %651 = vmatprep.subr.bf16.mxu0 0
        %652 = vmatpush1.bf16.xpose.msra.mxu0 0
        %653 = vmatprep.subr.bf16.mxu0 0
        %654 = vmatpush1.bf16.xpose.msra.mxu0 0
        %655 = vmatprep.subr.bf16.mxu0 0
        %656 = vmatpush1.bf16.xpose.msra.mxu0 0
        %657 = vmatprep.subr.bf16.mxu0 0
        %658 = vmatpush1.bf16.xpose.msra.mxu0 0
        %659 = vmatprep.subr.bf16.mxu0 0
        %660 = vmatpush1.bf16.xpose.msra.mxu0 0
        %661 = vmatprep.subr.bf16.mxu0 0
        %662 = vmatpush1.bf16.xpose.msra.mxu0 0
        %663 = vmatprep.subr.bf16.mxu0 0
        %664 = vmatpush1.bf16.xpose.msra.mxu0 0
        %665 = vmatprep.subr.bf16.mxu0 0
        %666 = vmatpush1.bf16.xpose.msra.mxu0 %v649
        %667 = vmatprep.subr.bf16.mxu0 0
        %668 = vmatpush2.bf16.xpose.msra.mxu0 0
        %669 = vmatprep.subr.bf16.mxu0 0
        %670 = vmatpush2.bf16.xpose.msra.mxu0 0
        %671 = vmatprep.subr.bf16.mxu0 0
        %672 = vmatpush2.bf16.xpose.msra.mxu0 0
        %673 = vmatprep.subr.bf16.mxu0 0
        %674 = vmatpush2.bf16.xpose.msra.mxu0 0
        %675 = vmatprep.subr.bf16.mxu0 0
        %676 = vmatpush2.bf16.xpose.msra.mxu0 0
        %677 = vmatprep.subr.bf16.mxu0 0
        %678 = vmatpush2.bf16.xpose.msra.mxu0 0
        %679 = vmatprep.subr.bf16.mxu0 0
        %680 = vmatpush2.bf16.xpose.msra.mxu0 0
        %681 = vmatprep.subr.bf16.mxu0 0
        %682 = vmatpush2.bf16.xpose.msra.mxu0 0
        %683 = vmatprep.mubr.bf16.mxu0 0
        %684 = vmatmul.mubr.bf16.gmra.mxu0 %v646
        %v685 = vpop.f32.mrf.mxu0
        %v686 = vadd.f32 0.0, %v685
        %v687 = vpop.f32.mrf.mxu0
        %v688 = vpop.f32.mrf.mxu0
        %v689 = vpop.f32.mrf.mxu0
        %690 = vdwg.mxu0
        %v692 = vlaneseq
        %v693 = vshrl.u32 %v692, 7
        %v694 = vsub.s32 0, %v693
        %v695 = vrot.slane %v638, %v694
        %v697 = vmul.f32 %v633, %v695
        %v698 = vsel %vm644, %v697, 0.0
        %699 = vadd.xlane.f32.xlu0 %v698
        %v700 = vpop.xlane.xlu0 %699
        %v701 = vsel %vm644, %v686, -inf
        %702 = vmax.xlane.f32.xlu0 %v701
        %v703 = vpop.xlane.xlu0 %702
        %v704 = vmax.f32 %v703, %v700
        %v705 = vsub.f32 %v686, %v704
        %v706 = vmul.f32 %v705, 1.442695
        %v707 = vpow.pop %v706
        %v708 = vsub.f32 %v700, %v704
        %v709 = vmul.f32 %v708, 1.442695
        %v710 = vpow.pop %v709
        %v711 = vsel %vm644, %v707, 0.0
        %712 = vadd.xlane.f32.xlu0 %v711
        %v713 = vpop.xlane.xlu0 %712
        %v714 = vadd.f32 %v713, %v710
        %v715 = vrcp.pop %v714
        %v716 = vpack.c.bf16 %v707, %v707
        %v718 = vlaneseq
        %v719 = vshrl.u32 %v718, 7
        %v720 = vsub.s32 0, %v719
        %v721 = vrot.slane %v639, %v720
        %v723 = vmul.f32 %v710, %v721
        %724 = vrot.lane.b32.xlu0 %v640, 64
        %v725 = vpop.permute.xlu0 %724
        %v727 = vsel %vm644, %v716, 0
        %vm729 = vcmask 1043456
        %v731 = vsel %vm729, %v725, 0
        %733 = vmatprep.subr.bf16.mxu0 0
        %734 = vmatpush1.bf16.msra.mxu0 0
        %735 = vmatprep.subr.bf16.mxu0 0
        %736 = vmatpush1.bf16.msra.mxu0 0
        %737 = vmatprep.subr.bf16.mxu0 0
        %738 = vmatpush1.bf16.msra.mxu0 0
        %739 = vmatprep.subr.bf16.mxu0 0
        %740 = vmatpush1.bf16.msra.mxu0 0
        %741 = vmatprep.subr.bf16.mxu0 0
        %742 = vmatpush1.bf16.msra.mxu0 0
        %743 = vmatprep.subr.bf16.mxu0 0
        %744 = vmatpush1.bf16.msra.mxu0 0
        %745 = vmatprep.subr.bf16.mxu0 0
        %746 = vmatpush1.bf16.msra.mxu0 0
        %747 = vmatprep.subr.bf16.mxu0 0
        %748 = vmatpush1.bf16.msra.mxu0 %v731
        %749 = vmatprep.subr.bf16.mxu0 0
        %750 = vmatpush2.bf16.msra.mxu0 0
        %751 = vmatprep.subr.bf16.mxu0 0
        %752 = vmatpush2.bf16.msra.mxu0 0
        %753 = vmatprep.subr.bf16.mxu0 0
        %754 = vmatpush2.bf16.msra.mxu0 0
        %755 = vmatprep.subr.bf16.mxu0 0
        %756 = vmatpush2.bf16.msra.mxu0 0
        %757 = vmatprep.subr.bf16.mxu0 0
        %758 = vmatpush2.bf16.msra.mxu0 0
        %759 = vmatprep.subr.bf16.mxu0 0
        %760 = vmatpush2.bf16.msra.mxu0 0
        %761 = vmatprep.subr.bf16.mxu0 0
        %762 = vmatpush2.bf16.msra.mxu0 0
        %763 = vmatprep.subr.bf16.mxu0 0
        %764 = vmatpush2.bf16.msra.mxu0 0
        %765 = vmatprep.mubr.bf16.mxu0 0
        %766 = vmatmul.mubr.bf16.gmra.mxu0 %v727
        %v767 = vpop.f32.mrf.mxu0
        %v768 = vadd.f32 %v723, %v767
        %v769 = vpop.f32.mrf.mxu0
        %v770 = vpop.f32.mrf.mxu0
        %v771 = vpop.f32.mrf.mxu0
        %772 = vdwg.mxu0
        %v773 = vmul.f32 %v768, %v715
        %v774 = vpack.c.bf16 %v773, %v773
        %v775 = vld [vmem:[%s5] sm:$0xf]
        %776 = vrot.lane.b32.xlu0 %v640, 120
        %v777 = vpop.permute.xlu0 %776
        %778 = vrot.lane.b32.xlu0 %v640, 88
        %v779 = vpop.permute.xlu0 %778
        %v781 = vsel %vm644, %v777, 0
        %v784 = vsel %vm644, %v779, 0
        %786 = vmatprep.subr.bf16.mxu0 0
        %787 = vmatpush1.bf16.xpose.msra.mxu0 0
        %788 = vmatprep.subr.bf16.mxu0 0
        %789 = vmatpush1.bf16.xpose.msra.mxu0 0
        %790 = vmatprep.subr.bf16.mxu0 0
        %791 = vmatpush1.bf16.xpose.msra.mxu0 0
        %792 = vmatprep.subr.bf16.mxu0 0
        %793 = vmatpush1.bf16.xpose.msra.mxu0 0
        %794 = vmatprep.subr.bf16.mxu0 0
        %795 = vmatpush1.bf16.xpose.msra.mxu0 0
        %796 = vmatprep.subr.bf16.mxu0 0
        %797 = vmatpush1.bf16.xpose.msra.mxu0 0
        %798 = vmatprep.subr.bf16.mxu0 0
        %799 = vmatpush1.bf16.xpose.msra.mxu0 0
        %800 = vmatprep.subr.bf16.mxu0 0
        %801 = vmatpush1.bf16.xpose.msra.mxu0 %v784
        %802 = vmatprep.subr.bf16.mxu0 0
        %803 = vmatpush2.bf16.xpose.msra.mxu0 0
        %804 = vmatprep.subr.bf16.mxu0 0
        %805 = vmatpush2.bf16.xpose.msra.mxu0 0
        %806 = vmatprep.subr.bf16.mxu0 0
        %807 = vmatpush2.bf16.xpose.msra.mxu0 0
        %808 = vmatprep.subr.bf16.mxu0 0
        %809 = vmatpush2.bf16.xpose.msra.mxu0 0
        %810 = vmatprep.subr.bf16.mxu0 0
        %811 = vmatpush2.bf16.xpose.msra.mxu0 0
        %812 = vmatprep.subr.bf16.mxu0 0
        %813 = vmatpush2.bf16.xpose.msra.mxu0 0
        %814 = vmatprep.subr.bf16.mxu0 0
        %815 = vmatpush2.bf16.xpose.msra.mxu0 0
        %816 = vmatprep.subr.bf16.mxu0 0
        %817 = vmatpush2.bf16.xpose.msra.mxu0 0
        %818 = vmatprep.mubr.bf16.mxu0 0
        %819 = vmatmul.mubr.bf16.gmra.mxu0 %v781
        %v820 = vpop.f32.mrf.mxu0
        %v821 = vadd.f32 0.0, %v820
        %v822 = vpop.f32.mrf.mxu0
        %v823 = vpop.f32.mrf.mxu0
        %v824 = vpop.f32.mrf.mxu0
        %825 = vdwg.mxu0
        %827 = vrot.lane.b32.xlu0 %v697, 120
        %v828 = vpop.permute.xlu0 %827
        %v830 = vsel %vm644, %v828, 0.0
        %831 = vadd.xlane.f32.xlu0 %v830
        %v832 = vpop.xlane.xlu0 %831
        %v833 = vsel %vm644, %v821, -inf
        %834 = vmax.xlane.f32.xlu0 %v833
        %v835 = vpop.xlane.xlu0 %834
        %v836 = vmax.f32 %v835, %v832
        %v837 = vsub.f32 %v821, %v836
        %v838 = vmul.f32 %v837, 1.442695
        %v839 = vpow.pop %v838
        %v840 = vsub.f32 %v832, %v836
        %v841 = vmul.f32 %v840, 1.442695
        %v842 = vpow.pop %v841
        %v843 = vsel %vm644, %v839, 0.0
        %844 = vadd.xlane.f32.xlu0 %v843
        %v845 = vpop.xlane.xlu0 %844
        %v846 = vadd.f32 %v845, %v842
        %v847 = vrcp.pop %v846
        %v848 = vpack.c.bf16 %v839, %v839
        %v849 = vmul.f32 %v842, %v721
        %850 = vrot.lane.b32.xlu0 %v640, 56
        %v851 = vpop.permute.xlu0 %850
        %853 = vrot.lane.b32.xlu0 %v849, 120
        %v854 = vpop.permute.xlu0 %853
        %v857 = vsel %vm644, %v848, 0
        %v860 = vsel %vm729, %v851, 0
        %862 = vmatprep.subr.bf16.mxu0 0
        %863 = vmatpush1.bf16.msra.mxu0 0
        %864 = vmatprep.subr.bf16.mxu0 0
        %865 = vmatpush1.bf16.msra.mxu0 0
        %866 = vmatprep.subr.bf16.mxu0 0
        %867 = vmatpush1.bf16.msra.mxu0 0
        %868 = vmatprep.subr.bf16.mxu0 0
        %869 = vmatpush1.bf16.msra.mxu0 0
        %870 = vmatprep.subr.bf16.mxu0 0
        %871 = vmatpush1.bf16.msra.mxu0 0
        %872 = vmatprep.subr.bf16.mxu0 0
        %873 = vmatpush1.bf16.msra.mxu0 0
        %874 = vmatprep.subr.bf16.mxu0 0
        %875 = vmatpush1.bf16.msra.mxu0 0
        %876 = vmatprep.subr.bf16.mxu0 0
        %877 = vmatpush1.bf16.msra.mxu0 %v860
        %878 = vmatprep.subr.bf16.mxu0 0
        %879 = vmatpush2.bf16.msra.mxu0 0
        %880 = vmatprep.subr.bf16.mxu0 0
        %881 = vmatpush2.bf16.msra.mxu0 0
        %882 = vmatprep.subr.bf16.mxu0 0
        %883 = vmatpush2.bf16.msra.mxu0 0
        %884 = vmatprep.subr.bf16.mxu0 0
        %885 = vmatpush2.bf16.msra.mxu0 0
        %886 = vmatprep.subr.bf16.mxu0 0
        %887 = vmatpush2.bf16.msra.mxu0 0
        %888 = vmatprep.subr.bf16.mxu0 0
        %889 = vmatpush2.bf16.msra.mxu0 0
        %890 = vmatprep.subr.bf16.mxu0 0
        %891 = vmatpush2.bf16.msra.mxu0 0
        %892 = vmatprep.subr.bf16.mxu0 0
        %893 = vmatpush2.bf16.msra.mxu0 0
        %894 = vmatprep.mubr.bf16.mxu0 0
        %895 = vmatmul.mubr.bf16.gmra.mxu0 %v857
        %v896 = vpop.f32.mrf.mxu0
        %v897 = vadd.f32 %v854, %v896
        %v898 = vpop.f32.mrf.mxu0
        %v899 = vpop.f32.mrf.mxu0
        %v900 = vpop.f32.mrf.mxu0
        %901 = vdwg.mxu0
        %v902 = vmul.f32 %v897, %v847
        %v903 = vpack.c.bf16 %v902, %v902
        %s904 = scalar_lea.vmem %s5, 4
        %v905 = vld [vmem:[%s904] sm:$0xf]
        %v907 = vsel %vm644, %v903, 0
        %v910 = vsel %vm729, %v905, 0
        %912 = vmatprep.subr.bf16.mxu0 0
        %913 = vmatpush1.bf16.msra.mxu0 0
        %914 = vmatprep.subr.bf16.mxu0 0
        %915 = vmatpush1.bf16.msra.mxu0 0
        %916 = vmatprep.subr.bf16.mxu0 0
        %917 = vmatpush1.bf16.msra.mxu0 0
        %918 = vmatprep.subr.bf16.mxu0 0
        %919 = vmatpush1.bf16.msra.mxu0 0
        %920 = vmatprep.subr.bf16.mxu0 0
        %921 = vmatpush1.bf16.msra.mxu0 0
        %922 = vmatprep.subr.bf16.mxu0 0
        %923 = vmatpush1.bf16.msra.mxu0 0
        %924 = vmatprep.subr.bf16.mxu0 0
        %925 = vmatpush1.bf16.msra.mxu0 0
        %926 = vmatprep.subr.bf16.mxu0 0
        %927 = vmatpush1.bf16.msra.mxu0 %v910
        %928 = vmatprep.subr.bf16.mxu0 0
        %929 = vmatpush2.bf16.msra.mxu0 0
        %930 = vmatprep.subr.bf16.mxu0 0
        %931 = vmatpush2.bf16.msra.mxu0 0
        %932 = vmatprep.subr.bf16.mxu0 0
        %933 = vmatpush2.bf16.msra.mxu0 0
        %934 = vmatprep.subr.bf16.mxu0 0
        %935 = vmatpush2.bf16.msra.mxu0 0
        %936 = vmatprep.subr.bf16.mxu0 0
        %937 = vmatpush2.bf16.msra.mxu0 0
        %938 = vmatprep.subr.bf16.mxu0 0
        %939 = vmatpush2.bf16.msra.mxu0 0
        %940 = vmatprep.subr.bf16.mxu0 0
        %941 = vmatpush2.bf16.msra.mxu0 0
        %942 = vmatprep.subr.bf16.mxu0 0
        %943 = vmatpush2.bf16.msra.mxu0 0
        %944 = vmatprep.mubr.bf16.mxu0 0
        %945 = vmatmul.mubr.bf16.gmra.mxu0 %v907
        %v946 = vpop.f32.mrf.mxu0
        %v947 = vadd.f32 0.0, %v946
        %v948 = vpop.f32.mrf.mxu0
        %v949 = vpop.f32.mrf.mxu0
        %v950 = vpop.f32.mrf.mxu0
        %951 = vdwg.mxu0
        %v953 = vsel %vm644, %v774, 0
        %v956 = vsel %vm729, %v775, 0
        %958 = vmatprep.subr.bf16.mxu0 0
        %959 = vmatpush1.bf16.msra.mxu0 0
        %960 = vmatprep.subr.bf16.mxu0 0
        %961 = vmatpush1.bf16.msra.mxu0 0
        %962 = vmatprep.subr.bf16.mxu0 0
        %963 = vmatpush1.bf16.msra.mxu0 0
        %964 = vmatprep.subr.bf16.mxu0 0
        %965 = vmatpush1.bf16.msra.mxu0 0
        %966 = vmatprep.subr.bf16.mxu0 0
        %967 = vmatpush1.bf16.msra.mxu0 0
        %968 = vmatprep.subr.bf16.mxu0 0
        %969 = vmatpush1.bf16.msra.mxu0 0
        %970 = vmatprep.subr.bf16.mxu0 0
        %971 = vmatpush1.bf16.msra.mxu0 0
        %972 = vmatprep.subr.bf16.mxu0 0
        %973 = vmatpush1.bf16.msra.mxu0 %v956
        %974 = vmatprep.subr.bf16.mxu0 0
        %975 = vmatpush2.bf16.msra.mxu0 0
        %976 = vmatprep.subr.bf16.mxu0 0
        %977 = vmatpush2.bf16.msra.mxu0 0
        %978 = vmatprep.subr.bf16.mxu0 0
        %979 = vmatpush2.bf16.msra.mxu0 0
        %980 = vmatprep.subr.bf16.mxu0 0
        %981 = vmatpush2.bf16.msra.mxu0 0
        %982 = vmatprep.subr.bf16.mxu0 0
        %983 = vmatpush2.bf16.msra.mxu0 0
        %984 = vmatprep.subr.bf16.mxu0 0
        %985 = vmatpush2.bf16.msra.mxu0 0
        %986 = vmatprep.subr.bf16.mxu0 0
        %987 = vmatpush2.bf16.msra.mxu0 0
        %988 = vmatprep.subr.bf16.mxu0 0
        %989 = vmatpush2.bf16.msra.mxu0 0
        %990 = vmatprep.mubr.bf16.mxu0 0
        %991 = vmatmul.mubr.bf16.gmra.mxu0 %v953
        %v992 = vpop.f32.mrf.mxu0
        %v993 = vadd.f32 %v947, %v992
        %v994 = vpop.f32.mrf.mxu0
        %v995 = vpop.f32.mrf.mxu0
        %v996 = vpop.f32.mrf.mxu0
        %997 = vdwg.mxu0
        %998 = vrot.lane.b32.xlu0 %v640, 112
        %v999 = vpop.permute.xlu0 %998
        %1000 = vrot.lane.b32.xlu0 %v640, 80
        %v1001 = vpop.permute.xlu0 %1000
        %v1003 = vsel %vm644, %v999, 0
        %v1006 = vsel %vm644, %v1001, 0
        %1008 = vmatprep.subr.bf16.mxu0 0
        %1009 = vmatpush1.bf16.xpose.msra.mxu0 0
        %1010 = vmatprep.subr.bf16.mxu0 0
        %1011 = vmatpush1.bf16.xpose.msra.mxu0 0
        %1012 = vmatprep.subr.bf16.mxu0 0
        %1013 = vmatpush1.bf16.xpose.msra.mxu0 0
        %1014 = vmatprep.subr.bf16.mxu0 0
        %1015 = vmatpush1.bf16.xpose.msra.mxu0 0
        %1016 = vmatprep.subr.bf16.mxu0 0
        %1017 = vmatpush1.bf16.xpose.msra.mxu0 0
        %1018 = vmatprep.subr.bf16.mxu0 0
        %1019 = vmatpush1.bf16.xpose.msra.mxu0 0
        %1020 = vmatprep.subr.bf16.mxu0 0
        %1021 = vmatpush1.bf16.xpose.msra.mxu0 0
        %1022 = vmatprep.subr.bf16.mxu0 0
        %1023 = vmatpush1.bf16.xpose.msra.mxu0 %v1006
        %1024 = vmatprep.subr.bf16.mxu0 0
        %1025 = vmatpush2.bf16.xpose.msra.mxu0 0
        %1026 = vmatprep.subr.bf16.mxu0 0
        %1027 = vmatpush2.bf16.xpose.msra.mxu0 0
        %1028 = vmatprep.subr.bf16.mxu0 0
        %1029 = vmatpush2.bf16.xpose.msra.mxu0 0
        %1030 = vmatprep.subr.bf16.mxu0 0
        %1031 = vmatpush2.bf16.xpose.msra.mxu0 0
        %1032 = vmatprep.subr.bf16.mxu0 0
        %1033 = vmatpush2.bf16.xpose.msra.mxu0 0
        %1034 = vmatprep.subr.bf16.mxu0 0
        %1035 = vmatpush2.bf16.xpose.msra.mxu0 0
        %1036 = vmatprep.subr.bf16.mxu0 0
        %1037 = vmatpush2.bf16.xpose.msra.mxu0 0
        %1038 = vmatprep.subr.bf16.mxu0 0
        %1039 = vmatpush2.bf16.xpose.msra.mxu0 0
        %1040 = vmatprep.mubr.bf16.mxu0 0
        %1041 = vmatmul.mubr.bf16.gmra.mxu0 %v1003
        %v1042 = vpop.f32.mrf.mxu0
        %v1043 = vadd.f32 0.0, %v1042
        %v1044 = vpop.f32.mrf.mxu0
        %v1045 = vpop.f32.mrf.mxu0
        %v1046 = vpop.f32.mrf.mxu0
        %1047 = vdwg.mxu0
        %1048 = vrot.lane.b32.xlu0 %v697, 112
        %v1049 = vpop.permute.xlu0 %1048
        %v1051 = vsel %vm644, %v1049, 0.0
        %1052 = vadd.xlane.f32.xlu0 %v1051
        %v1053 = vpop.xlane.xlu0 %1052
        %v1054 = vsel %vm644, %v1043, -inf
        %1055 = vmax.xlane.f32.xlu0 %v1054
        %v1056 = vpop.xlane.xlu0 %1055
        %v1057 = vmax.f32 %v1056, %v1053
        %v1058 = vsub.f32 %v1043, %v1057
        %v1059 = vmul.f32 %v1058, 1.442695
        %v1060 = vpow.pop %v1059
        %v1061 = vsub.f32 %v1053, %v1057
        %v1062 = vmul.f32 %v1061, 1.442695
        %v1063 = vpow.pop %v1062
        %v1064 = vsel %vm644, %v1060, 0.0
        %1065 = vadd.xlane.f32.xlu0 %v1064
        %v1066 = vpop.xlane.xlu0 %1065
        %v1067 = vadd.f32 %v1066, %v1063
        %v1068 = vrcp.pop %v1067
        %v1069 = vpack.c.bf16 %v1060, %v1060
        %v1070 = vmul.f32 %v1063, %v721
        %1071 = vrot.lane.b32.xlu0 %v640, 48
        %v1072 = vpop.permute.xlu0 %1071
        %1074 = vrot.lane.b32.xlu0 %v1070, 112
        %v1075 = vpop.permute.xlu0 %1074
        %v1078 = vsel %vm644, %v1069, 0
        %v1081 = vsel %vm729, %v1072, 0
        %1083 = vmatprep.subr.bf16.mxu0 0
        %1084 = vmatpush1.bf16.msra.mxu0 0
        %1085 = vmatprep.subr.bf16.mxu0 0
        %1086 = vmatpush1.bf16.msra.mxu0 0
        %1087 = vmatprep.subr.bf16.mxu0 0
        %1088 = vmatpush1.bf16.msra.mxu0 0
        %1089 = vmatprep.subr.bf16.mxu0 0
        %1090 = vmatpush1.bf16.msra.mxu0 0
        %1091 = vmatprep.subr.bf16.mxu0 0
        %1092 = vmatpush1.bf16.msra.mxu0 0
        %1093 = vmatprep.subr.bf16.mxu0 0
        %1094 = vmatpush1.bf16.msra.mxu0 0
        %1095 = vmatprep.subr.bf16.mxu0 0
        %1096 = vmatpush1.bf16.msra.mxu0 0
        %1097 = vmatprep.subr.bf16.mxu0 0
        %1098 = vmatpush1.bf16.msra.mxu0 %v1081
        %1099 = vmatprep.subr.bf16.mxu0 0
        %1100 = vmatpush2.bf16.msra.mxu0 0
        %1101 = vmatprep.subr.bf16.mxu0 0
        %1102 = vmatpush2.bf16.msra.mxu0 0
        %1103 = vmatprep.subr.bf16.mxu0 0
        %1104 = vmatpush2.bf16.msra.mxu0 0
        %1105 = vmatprep.subr.bf16.mxu0 0
        %1106 = vmatpush2.bf16.msra.mxu0 0
        %1107 = vmatprep.subr.bf16.mxu0 0
        %1108 = vmatpush2.bf16.msra.mxu0 0
        %1109 = vmatprep.subr.bf16.mxu0 0
        %1110 = vmatpush2.bf16.msra.mxu0 0
        %1111 = vmatprep.subr.bf16.mxu0 0
        %1112 = vmatpush2.bf16.msra.mxu0 0
        %1113 = vmatprep.subr.bf16.mxu0 0
        %1114 = vmatpush2.bf16.msra.mxu0 0
        %1115 = vmatprep.mubr.bf16.mxu0 0
        %1116 = vmatmul.mubr.bf16.gmra.mxu0 %v1078
        %v1117 = vpop.f32.mrf.mxu0
        %v1118 = vadd.f32 %v1075, %v1117
        %v1119 = vpop.f32.mrf.mxu0
        %v1120 = vpop.f32.mrf.mxu0
        %v1121 = vpop.f32.mrf.mxu0
        %1122 = vdwg.mxu0
        %v1123 = vmul.f32 %v1118, %v1068
        %v1124 = vpack.c.bf16 %v1123, %v1123
        %s1125 = scalar_lea.vmem %s5, 8
        %v1126 = vld [vmem:[%s1125] sm:$0xf]
        %v1128 = vsel %vm644, %v1124, 0
        %v1131 = vsel %vm729, %v1126, 0
        %1133 = vmatprep.subr.bf16.mxu0 0
        %1134 = vmatpush1.bf16.msra.mxu0 0
        %1135 = vmatprep.subr.bf16.mxu0 0
        %1136 = vmatpush1.bf16.msra.mxu0 0
        %1137 = vmatprep.subr.bf16.mxu0 0
        %1138 = vmatpush1.bf16.msra.mxu0 0
        %1139 = vmatprep.subr.bf16.mxu0 0
        %1140 = vmatpush1.bf16.msra.mxu0 0
        %1141 = vmatprep.subr.bf16.mxu0 0
        %1142 = vmatpush1.bf16.msra.mxu0 0
        %1143 = vmatprep.subr.bf16.mxu0 0
        %1144 = vmatpush1.bf16.msra.mxu0 0
        %1145 = vmatprep.subr.bf16.mxu0 0
        %1146 = vmatpush1.bf16.msra.mxu0 0
        %1147 = vmatprep.subr.bf16.mxu0 0
        %1148 = vmatpush1.bf16.msra.mxu0 %v1131
        %1149 = vmatprep.subr.bf16.mxu0 0
        %1150 = vmatpush2.bf16.msra.mxu0 0
        %1151 = vmatprep.subr.bf16.mxu0 0
        %1152 = vmatpush2.bf16.msra.mxu0 0
        %1153 = vmatprep.subr.bf16.mxu0 0
        %1154 = vmatpush2.bf16.msra.mxu0 0
        %1155 = vmatprep.subr.bf16.mxu0 0
        %1156 = vmatpush2.bf16.msra.mxu0 0
        %1157 = vmatprep.subr.bf16.mxu0 0
        %1158 = vmatpush2.bf16.msra.mxu0 0
        %1159 = vmatprep.subr.bf16.mxu0 0
        %1160 = vmatpush2.bf16.msra.mxu0 0
        %1161 = vmatprep.subr.bf16.mxu0 0
        %1162 = vmatpush2.bf16.msra.mxu0 0
        %1163 = vmatprep.subr.bf16.mxu0 0
        %1164 = vmatpush2.bf16.msra.mxu0 0
        %1165 = vmatprep.mubr.bf16.mxu0 0
        %1166 = vmatmul.mubr.bf16.gmra.mxu0 %v1128
        %v1167 = vpop.f32.mrf.mxu0
        %v1168 = vadd.f32 0.0, %v1167
        %v1169 = vpop.f32.mrf.mxu0
        %v1170 = vpop.f32.mrf.mxu0
        %v1171 = vpop.f32.mrf.mxu0
        %1172 = vdwg.mxu0
        %v1173 = vadd.f32 %v993, %v1168
        %1174 = vrot.lane.b32.xlu0 %v640, 104
        %v1175 = vpop.permute.xlu0 %1174
        %1176 = vrot.lane.b32.xlu0 %v640, 72
        %v1177 = vpop.permute.xlu0 %1176
        %v1179 = vsel %vm644, %v1175, 0
        %v1182 = vsel %vm644, %v1177, 0
        %1184 = vmatprep.subr.bf16.mxu0 0
        %1185 = vmatpush1.bf16.xpose.msra.mxu0 0
        %1186 = vmatprep.subr.bf16.mxu0 0
        %1187 = vmatpush1.bf16.xpose.msra.mxu0 0
        %1188 = vmatprep.subr.bf16.mxu0 0
        %1189 = vmatpush1.bf16.xpose.msra.mxu0 0
        %1190 = vmatprep.subr.bf16.mxu0 0
        %1191 = vmatpush1.bf16.xpose.msra.mxu0 0
        %1192 = vmatprep.subr.bf16.mxu0 0
        %1193 = vmatpush1.bf16.xpose.msra.mxu0 0
        %1194 = vmatprep.subr.bf16.mxu0 0
        %1195 = vmatpush1.bf16.xpose.msra.mxu0 0
        %1196 = vmatprep.subr.bf16.mxu0 0
        %1197 = vmatpush1.bf16.xpose.msra.mxu0 0
        %1198 = vmatprep.subr.bf16.mxu0 0
        %1199 = vmatpush1.bf16.xpose.msra.mxu0 %v1182
        %1200 = vmatprep.subr.bf16.mxu0 0
        %1201 = vmatpush2.bf16.xpose.msra.mxu0 0
        %1202 = vmatprep.subr.bf16.mxu0 0
        %1203 = vmatpush2.bf16.xpose.msra.mxu0 0
        %1204 = vmatprep.subr.bf16.mxu0 0
        %1205 = vmatpush2.bf16.xpose.msra.mxu0 0
        %1206 = vmatprep.subr.bf16.mxu0 0
        %1207 = vmatpush2.bf16.xpose.msra.mxu0 0
        %1208 = vmatprep.subr.bf16.mxu0 0
        %1209 = vmatpush2.bf16.xpose.msra.mxu0 0
        %1210 = vmatprep.subr.bf16.mxu0 0
        %1211 = vmatpush2.bf16.xpose.msra.mxu0 0
        %1212 = vmatprep.subr.bf16.mxu0 0
        %1213 = vmatpush2.bf16.xpose.msra.mxu0 0
        %1214 = vmatprep.subr.bf16.mxu0 0
        %1215 = vmatpush2.bf16.xpose.msra.mxu0 0
        %1216 = vmatprep.mubr.bf16.mxu0 0
        %1217 = vmatmul.mubr.bf16.gmra.mxu0 %v1179
        %v1218 = vpop.f32.mrf.mxu0
        %v1219 = vadd.f32 0.0, %v1218
        %v1220 = vpop.f32.mrf.mxu0
        %v1221 = vpop.f32.mrf.mxu0
        %v1222 = vpop.f32.mrf.mxu0
        %1223 = vdwg.mxu0
        %1224 = vrot.lane.b32.xlu0 %v697, 104
        %v1225 = vpop.permute.xlu0 %1224
        %v1227 = vsel %vm644, %v1225, 0.0
        %1228 = vadd.xlane.f32.xlu0 %v1227
        %v1229 = vpop.xlane.xlu0 %1228
        %v1230 = vsel %vm644, %v1219, -inf
        %1231 = vmax.xlane.f32.xlu0 %v1230
        %v1232 = vpop.xlane.xlu0 %1231
        %v1233 = vmax.f32 %v1232, %v1229
        %v1234 = vsub.f32 %v1219, %v1233
        %v1235 = vmul.f32 %v1234, 1.442695
        %v1236 = vpow.pop %v1235
        %v1237 = vsub.f32 %v1229, %v1233
        %v1238 = vmul.f32 %v1237, 1.442695
        %v1239 = vpow.pop %v1238
        %v1240 = vsel %vm644, %v1236, 0.0
        %1241 = vadd.xlane.f32.xlu0 %v1240
        %v1242 = vpop.xlane.xlu0 %1241
        %v1243 = vadd.f32 %v1242, %v1239
        %v1244 = vrcp.pop %v1243
        %v1245 = vpack.c.bf16 %v1236, %v1236
        %v1246 = vmul.f32 %v1239, %v721
        %1247 = vrot.lane.b32.xlu0 %v640, 40
        %v1248 = vpop.permute.xlu0 %1247
        %1250 = vrot.lane.b32.xlu0 %v1246, 104
        %v1251 = vpop.permute.xlu0 %1250
        %v1254 = vsel %vm644, %v1245, 0
        %v1257 = vsel %vm729, %v1248, 0
        %1259 = vmatprep.subr.bf16.mxu0 0
        %1260 = vmatpush1.bf16.msra.mxu0 0
        %1261 = vmatprep.subr.bf16.mxu0 0
        %1262 = vmatpush1.bf16.msra.mxu0 0
        %1263 = vmatprep.subr.bf16.mxu0 0
        %1264 = vmatpush1.bf16.msra.mxu0 0
        %1265 = vmatprep.subr.bf16.mxu0 0
        %1266 = vmatpush1.bf16.msra.mxu0 0
        %1267 = vmatprep.subr.bf16.mxu0 0
        %1268 = vmatpush1.bf16.msra.mxu0 0
        %1269 = vmatprep.subr.bf16.mxu0 0
        %1270 = vmatpush1.bf16.msra.mxu0 0
        %1271 = vmatprep.subr.bf16.mxu0 0
        %1272 = vmatpush1.bf16.msra.mxu0 0
        %1273 = vmatprep.subr.bf16.mxu0 0
        %1274 = vmatpush1.bf16.msra.mxu0 %v1257
        %1275 = vmatprep.subr.bf16.mxu0 0
        %1276 = vmatpush2.bf16.msra.mxu0 0
        %1277 = vmatprep.subr.bf16.mxu0 0
        %1278 = vmatpush2.bf16.msra.mxu0 0
        %1279 = vmatprep.subr.bf16.mxu0 0
        %1280 = vmatpush2.bf16.msra.mxu0 0
        %1281 = vmatprep.subr.bf16.mxu0 0
        %1282 = vmatpush2.bf16.msra.mxu0 0
        %1283 = vmatprep.subr.bf16.mxu0 0
        %1284 = vmatpush2.bf16.msra.mxu0 0
        %1285 = vmatprep.subr.bf16.mxu0 0
        %1286 = vmatpush2.bf16.msra.mxu0 0
        %1287 = vmatprep.subr.bf16.mxu0 0
        %1288 = vmatpush2.bf16.msra.mxu0 0
        %1289 = vmatprep.subr.bf16.mxu0 0
        %1290 = vmatpush2.bf16.msra.mxu0 0
        %1291 = vmatprep.mubr.bf16.mxu0 0
        %1292 = vmatmul.mubr.bf16.gmra.mxu0 %v1254
        %v1293 = vpop.f32.mrf.mxu0
        %v1294 = vadd.f32 %v1251, %v1293
        %v1295 = vpop.f32.mrf.mxu0
        %v1296 = vpop.f32.mrf.mxu0
        %v1297 = vpop.f32.mrf.mxu0
        %1298 = vdwg.mxu0
        %v1299 = vmul.f32 %v1294, %v1244
        %v1300 = vpack.c.bf16 %v1299, %v1299
        %s1301 = scalar_lea.vmem %s5, 12
        %v1302 = vld [vmem:[%s1301] sm:$0xf]
        %v1304 = vsel %vm644, %v1300, 0
        %v1307 = vsel %vm729, %v1302, 0
        %1309 = vmatprep.subr.bf16.mxu0 0
        %1310 = vmatpush1.bf16.msra.mxu0 0
        %1311 = vmatprep.subr.bf16.mxu0 0
        %1312 = vmatpush1.bf16.msra.mxu0 0
        %1313 = vmatprep.subr.bf16.mxu0 0
        %1314 = vmatpush1.bf16.msra.mxu0 0
        %1315 = vmatprep.subr.bf16.mxu0 0
        %1316 = vmatpush1.bf16.msra.mxu0 0
        %1317 = vmatprep.subr.bf16.mxu0 0
        %1318 = vmatpush1.bf16.msra.mxu0 0
        %1319 = vmatprep.subr.bf16.mxu0 0
        %1320 = vmatpush1.bf16.msra.mxu0 0
        %1321 = vmatprep.subr.bf16.mxu0 0
        %1322 = vmatpush1.bf16.msra.mxu0 0
        %1323 = vmatprep.subr.bf16.mxu0 0
        %1324 = vmatpush1.bf16.msra.mxu0 %v1307
        %1325 = vmatprep.subr.bf16.mxu0 0
        %1326 = vmatpush2.bf16.msra.mxu0 0
        %1327 = vmatprep.subr.bf16.mxu0 0
        %1328 = vmatpush2.bf16.msra.mxu0 0
        %1329 = vmatprep.subr.bf16.mxu0 0
        %1330 = vmatpush2.bf16.msra.mxu0 0
        %1331 = vmatprep.subr.bf16.mxu0 0
        %1332 = vmatpush2.bf16.msra.mxu0 0
        %1333 = vmatprep.subr.bf16.mxu0 0
        %1334 = vmatpush2.bf16.msra.mxu0 0
        %1335 = vmatprep.subr.bf16.mxu0 0
        %1336 = vmatpush2.bf16.msra.mxu0 0
        %1337 = vmatprep.subr.bf16.mxu0 0
        %1338 = vmatpush2.bf16.msra.mxu0 0
        %1339 = vmatprep.subr.bf16.mxu0 0
        %1340 = vmatpush2.bf16.msra.mxu0 0
        %1341 = vmatprep.mubr.bf16.mxu0 0
        %1342 = vmatmul.mubr.bf16.gmra.mxu0 %v1304
        %v1343 = vpop.f32.mrf.mxu0
        %v1344 = vadd.f32 0.0, %v1343
        %v1345 = vpop.f32.mrf.mxu0
        %v1346 = vpop.f32.mrf.mxu0
        %v1347 = vpop.f32.mrf.mxu0
        %1348 = vdwg.mxu0
        %v1349 = vadd.f32 %v1173, %v1344
        %v1350 = vld [vmem:[#allocation8] sm:$0x1]
        %v1352 = vlaneseq
        %v1353 = vshrl.u32 %v1352, 7
        %v1354 = vsub.s32 0, %v1353
        %v1355 = vrot.slane %v1350, %v1354
        %v1357 = vadd.f32 %v1349, %v1355
        %v1358 = vadd.f32 %v569, %v1357
        %v1359 = vld [vmem:[%s11] sm:$0x1]
        %v1360 = vld [vmem:[%s12] sm:$0x1]
        %v1361 = vsel %vm594, %v1358, 0.0
        %1362 = vadd.xlane.f32.xlu0 %v1361
        %v1363 = vpop.xlane.xlu0 %1362
        %v1364 = vrcp.pop 32.0
        %v1365 = vmul.f32 %v1363, %v1364
        %v1366 = vsub.f32 %v1358, %v1365
        %v1367 = vmul.f32 %v1366, %v1366
        %v1368 = vsel %vm594, %v1367, 0.0
        %1369 = vadd.xlane.f32.xlu0 %v1368
        %v1370 = vpop.xlane.xlu0 %1369
        %v1371 = vmul.f32 %v1370, %v1364
        %v1372 = vadd.f32 %v1371, 1e-05
        %v1373 = vrsqrt.pop %v1372
        %v1374 = vmul.f32 %v1366, %v1373
        %v1376 = vlaneseq
        %v1377 = vshrl.u32 %v1376, 7
        %v1378 = vsub.s32 0, %v1377
        %v1379 = vrot.slane %v1359, %v1378
        %v1381 = vmul.f32 %v1374, %v1379
        %v1383 = vlaneseq
        %v1384 = vshrl.u32 %v1383, 7
        %v1385 = vsub.s32 0, %v1384
        %v1386 = vrot.slane %v1360, %v1385
        %v1388 = vadd.f32 %v1381, %v1386
        %v1389 = vpack.c.bf16 %v1388, %v1388
        %v1390 = vld [vmem:[#allocation10] sm:$0xf]
        %v1391 = vld [vmem:[#allocation10 + $0x4] sm:$0xf]
        %v1392 = vld [vmem:[#allocation10 + $0x8] sm:$0xf]
        %v1393 = vld [vmem:[#allocation10 + $0xc] sm:$0xf]
        %v1394 = vld [vmem:[#allocation11] sm:$0x1]
        %v1396 = vlaneseq
        %v1397 = vshrl.u32 %v1396, 7
        %v1398 = vsub.s32 0, %v1397
        %v1399 = vrot.slane %v1394, %v1398
        %v1405 = vunpack.c.l.b16 %v1390
        %v1406 = vunpack.c.l.b16 %v1391
        %v1407 = vunpack.c.l.b16 %v1392
        %v1408 = vunpack.c.l.b16 %v1393
        %v1409 = vpack.c.b16 %v1406, %v1405
        %v1410 = vpack.c.b16 %v1408, %v1407
        %v1414 = vsel %vm594, %v1389, 0
        %1416 = vmatprep.subr.bf16.mxu0 0
        %1417 = vmatpush1.bf16.msra.mxu0 0
        %1418 = vmatprep.subr.bf16.mxu0 0
        %1419 = vmatpush1.bf16.msra.mxu0 0
        %1420 = vmatprep.subr.bf16.mxu0 0
        %1421 = vmatpush1.bf16.msra.mxu0 0
        %1422 = vmatprep.subr.bf16.mxu0 0
        %1423 = vmatpush1.bf16.msra.mxu0 0
        %1424 = vmatprep.subr.bf16.mxu0 0
        %1425 = vmatpush1.bf16.msra.mxu0 0
        %1426 = vmatprep.subr.bf16.mxu0 0
        %1427 = vmatpush1.bf16.msra.mxu0 0
        %1428 = vmatprep.subr.bf16.mxu0 0
        %1429 = vmatpush1.bf16.msra.mxu0 %v1410
        %1430 = vmatprep.subr.bf16.mxu0 0
        %1431 = vmatpush1.bf16.msra.mxu0 %v1409
        %1432 = vmatprep.subr.bf16.mxu0 0
        %1433 = vmatpush2.bf16.msra.mxu0 0
        %1434 = vmatprep.subr.bf16.mxu0 0
        %1435 = vmatpush2.bf16.msra.mxu0 0
        %1436 = vmatprep.subr.bf16.mxu0 0
        %1437 = vmatpush2.bf16.msra.mxu0 0
        %1438 = vmatprep.subr.bf16.mxu0 0
        %1439 = vmatpush2.bf16.msra.mxu0 0
        %1440 = vmatprep.subr.bf16.mxu0 0
        %1441 = vmatpush2.bf16.msra.mxu0 0
        %1442 = vmatprep.subr.bf16.mxu0 0
        %1443 = vmatpush2.bf16.msra.mxu0 0
        %1444 = vmatprep.subr.bf16.mxu0 0
        %1445 = vmatpush2.bf16.msra.mxu0 0
        %1446 = vmatprep.subr.bf16.mxu0 0
        %1447 = vmatpush2.bf16.msra.mxu0 0
        %1448 = vmatprep.mubr.bf16.mxu0 0
        %1449 = vmatmul.mubr.bf16.gmra.mxu0 %v1414
        %v1450 = vpop.f32.mrf.mxu0
        %v1451 = vadd.f32 %v1399, %v1450
        %v1452 = vpop.f32.mrf.mxu0
        %v1453 = vpop.f32.mrf.mxu0
        %v1454 = vpop.f32.mrf.mxu0
        %1455 = vdwg.mxu0
        %v1456 = vmax.f32 %v1451, 0.0
        %v1457 = vpack.c.bf16 %v1456, %v1456
        %v1458 = vld [vmem:[%s9] sm:$0xf]
        %v1459 = vld [vmem:[%s9 + $0x4] sm:$0xf]
        %v1460 = vld [vmem:[%s9 + $0x8] sm:$0xf]
        %v1461 = vld [vmem:[%s9 + $0xc] sm:$0xf]
        %v1462 = vld [vmem:[%s9 + $0x10] sm:$0xf]
        %v1463 = vld [vmem:[%s9 + $0x14] sm:$0xf]
        %v1464 = vld [vmem:[%s9 + $0x18] sm:$0xf]
        %v1465 = vld [vmem:[%s9 + $0x1c] sm:$0xf]
        %v1466 = vld [vmem:[%s10] sm:$0x1]
        %v1468 = vlaneseq
        %v1469 = vshrl.u32 %v1468, 7
        %v1470 = vsub.s32 0, %v1469
        %v1471 = vrot.slane %v1466, %v1470
        %v1481 = vunpack.c.l.b16 %v1458
        %v1482 = vunpack.c.l.b16 %v1459
        %v1483 = vunpack.c.l.b16 %v1460
        %v1484 = vunpack.c.l.b16 %v1461
        %v1485 = vunpack.c.l.b16 %v1462
        %v1486 = vunpack.c.l.b16 %v1463
        %v1487 = vunpack.c.l.b16 %v1464
        %v1488 = vunpack.c.l.b16 %v1465
        %v1489 = vpack.c.b16 %v1482, %v1481
        %v1490 = vpack.c.b16 %v1484, %v1483
        %v1491 = vpack.c.b16 %v1486, %v1485
        %v1492 = vpack.c.b16 %v1488, %v1487
        %vm1497 = vcmask 523264
        %v1499 = vsel %vm1497, %v1457, 0
        %1501 = vmatprep.subr.bf16.mxu0 0
        %1502 = vmatpush1.bf16.msra.mxu0 0
        %1503 = vmatprep.subr.bf16.mxu0 0
        %1504 = vmatpush1.bf16.msra.mxu0 0
        %1505 = vmatprep.subr.bf16.mxu0 0
        %1506 = vmatpush1.bf16.msra.mxu0 0
        %1507 = vmatprep.subr.bf16.mxu0 0
        %1508 = vmatpush1.bf16.msra.mxu0 0
        %1509 = vmatprep.subr.bf16.mxu0 0
        %1510 = vmatpush1.bf16.msra.mxu0 %v1492
        %1511 = vmatprep.subr.bf16.mxu0 0
        %1512 = vmatpush1.bf16.msra.mxu0 %v1491
        %1513 = vmatprep.subr.bf16.mxu0 0
        %1514 = vmatpush1.bf16.msra.mxu0 %v1490
        %1515 = vmatprep.subr.bf16.mxu0 0
        %1516 = vmatpush1.bf16.msra.mxu0 %v1489
        %1517 = vmatprep.subr.bf16.mxu0 0
        %1518 = vmatpush2.bf16.msra.mxu0 0
        %1519 = vmatprep.subr.bf16.mxu0 0
        %1520 = vmatpush2.bf16.msra.mxu0 0
        %1521 = vmatprep.subr.bf16.mxu0 0
        %1522 = vmatpush2.bf16.msra.mxu0 0
        %1523 = vmatprep.subr.bf16.mxu0 0
        %1524 = vmatpush2.bf16.msra.mxu0 0
        %1525 = vmatprep.subr.bf16.mxu0 0
        %1526 = vmatpush2.bf16.msra.mxu0 0
        %1527 = vmatprep.subr.bf16.mxu0 0
        %1528 = vmatpush2.bf16.msra.mxu0 0
        %1529 = vmatprep.subr.bf16.mxu0 0
        %1530 = vmatpush2.bf16.msra.mxu0 0
        %1531 = vmatprep.subr.bf16.mxu0 0
        %1532 = vmatpush2.bf16.msra.mxu0 0
        %1533 = vmatprep.mubr.bf16.mxu0 0
        %1534 = vmatmul.mubr.bf16.gmra.mxu0 %v1499
        %v1535 = vpop.f32.mrf.mxu0
        %v1536 = vadd.f32 %v1471, %v1535
        %v1537 = vpop.f32.mrf.mxu0
        %v1538 = vpop.f32.mrf.mxu0
        %v1539 = vpop.f32.mrf.mxu0
        %1540 = vdwg.mxu0
        %v1541 = vadd.f32 %v1536, %v1536
        %v1542 = vld [vmem:[%s13] sm:$0x1]
        %v1543 = vld [vmem:[%s14] sm:$0x1]
        %v1544 = vsel %vm594, %v1541, 0.0
        %1545 = vadd.xlane.f32.xlu0 %v1544
        %v1546 = vpop.xlane.xlu0 %1545
        %v1547 = vmul.f32 %v1546, %v1364
        %v1548 = vsub.f32 %v1541, %v1547
        %v1549 = vmul.f32 %v1548, %v1548
        %v1550 = vsel %vm594, %v1549, 0.0
        %1551 = vadd.xlane.f32.xlu0 %v1550
        %v1552 = vpop.xlane.xlu0 %1551
        %v1553 = vmul.f32 %v1552, %v1364
        %v1554 = vadd.f32 %v1553, 1e-05
        %v1555 = vrsqrt.pop %v1554
        %v1556 = vmul.f32 %v1548, %v1555
        %v1558 = vlaneseq
        %v1559 = vshrl.u32 %v1558, 7
        %v1560 = vsub.s32 0, %v1559
        %v1561 = vrot.slane %v1542, %v1560
        %v1563 = vmul.f32 %v1556, %v1561
        %v1565 = vlaneseq
        %v1566 = vshrl.u32 %v1565, 7
        %v1567 = vsub.s32 0, %v1566
        %v1568 = vrot.slane %v1543, %v1567
        %v1570 = vadd.f32 %v1563, %v1568
        %1571 = vst.msk [vmem:[%s563] sm:$0xff] %vm594, %v1570
        %s1572 = sand.u32 %s361, 1
        %s1573 = scalar_lea.sflag [#allocation4], %s1572
        %s1574 = sand.u32 %s361, 1
        %s1575 = smul.addr %s1574, 8
        %s1576 = scalar_lea.vmem [#allocation13], %s1575
        // Predicated region
        $region105: #{tpu_custom_call.1} parent=79 // pred_check
          %p1577 = pneg %p371
        $region106: #{tpu_custom_call.1} parent=79 // pred_check_branch
          %1579 = sbr.rel (%p1577) target = $region108
        $region107: #{tpu_custom_call.1} parent=79 // pred_region
          %s1581 = ssub.s32 128, 128
          %1582 = vsyncadd %s1573, %s1581
          %s1583 = smul.addr %s33, 128
          %s1584 = scalar_lea.hbm %s15, %s1583
          %s1586 = sshll.u32 %s1576, 4
          %s1587 = int_to_ptr.vmem [resolvable:$true] %s1586
          %1589 = dma.vmem_to_hbm [thread:$0]  %s1587, 128, %s1584, %s1573
        $region108: #{tpu_custom_call.1} parent=79 // pred_fallthru
          _
      $region80: #{tpu_custom_call.1} parent=5 // pred_fallthru
        _
      %p1590 = scmp.le.s32.totalorder 2, %s28
      // Predicated region
      $region109: #{tpu_custom_call.1} parent=5 // pred_check
        %p1591 = pneg %p1590
      $region110: #{tpu_custom_call.1} parent=5 // pred_check_branch
        %1593 = sbr.rel (%p1591) target = $region112
      $region111: #{tpu_custom_call.1} parent=5 // pred_region
        %s1594 = ssub.s32 %s28, 2
        // Predicated region
        $region113: #{tpu_custom_call.1} parent=111 // pred_check
          %p1595 = pneg %p377
        $region114: #{tpu_custom_call.1} parent=111 // pred_check_branch
          %1597 = sbr.rel (%p1595) target = $region116
        $region115: #{tpu_custom_call.1} parent=111 // pred_region
          %s1598 = sand.u32 %s362, 1
          %s1599 = scalar_lea.sflag [#allocation4], %s1598
          %s1600 = sand.u32 %s362, 1
          %s1601 = smul.addr %s1600, 8
          %s1602 = scalar_lea.vmem [#allocation13], %s1601
          %1603 = dma.done %s1599, 128
        $region116: #{tpu_custom_call.1} parent=111 // pred_fallthru
          _
      $region112: #{tpu_custom_call.1} parent=5 // pred_fallthru
        _
    $region6: #{tpu_custom_call.1} parent=1 // loop_footer
      %s32 = sadd.s32 1, %s28
    $region7: #{tpu_custom_call.1} parent=1 // loop_footer_branch
      %27 = sbr.rel target = $region3
    $region8: #{tpu_custom_call.1} parent=1 // loop_exit
      _
    %1604 = vsyncpa [#allocation3], 1
    %s1605 = scalar_lea.sflag [#allocation3], 1
    %1606 = vsyncpa %s1605, 1
    %1607 = vsyncpa [#allocation6], 1
    %1608 = vsyncpa [#allocation9], 1
    %1609 = vsyncpa [#allocation12], 1
    %1610 = vsyncpa [#allocation4], 1
    %s1611 = scalar_lea.sflag [#allocation4], 1
    %1612 = vsyncpa %s1611, 1

</llo_original>
